<compile_context>
chip_gen: v7x
topology: tpu7x:2x2x1
jax: 0.10.0
libtpu: 0.0.40
codegen_flags: <defaults>
</compile_context>

<pallas_src>
import functools

import numpy as np
import jax
import jax.numpy as jnp
from jax.experimental import pallas as pl
from jax.experimental.pallas import tpu as pltpu

_BN_EPS = 1e-5


# ----------------------------------------------------------------------------
# Pallas kernels
# ----------------------------------------------------------------------------
def _matmul_bias_act_kernel(a_ref, b_ref, bias_ref, o_ref, *, act):
    # a: (N, K) weights, b: (K, TM) pixels (lane-dense), bias: (N, 1).
    a = a_ref[...].astype(jnp.float32)
    b = b_ref[...].astype(jnp.float32)
    y = jnp.dot(a, b, preferred_element_type=jnp.float32) + bias_ref[...]
    if act == "relu":
        y = jnp.maximum(y, 0.0)
    elif act == "sigmoid":
        y = 1.0 / (1.0 + jnp.exp(-y))
    o_ref[...] = y.astype(o_ref.dtype)


def _affine_kernel(x_ref, s_ref, t_ref, o_ref):
    # Per-row (= per batch*channel) scale/shift: eval-mode BatchNorm.
    o_ref[...] = x_ref[...] * s_ref[...] + t_ref[...]


# ----------------------------------------------------------------------------
# Kernel wrappers
# ----------------------------------------------------------------------------
def _pick_col_tile(m, max_cols=4096):
    """Largest lane-dense column tile (multiple of 128) dividing m, capped."""
    if m <= max_cols or m % 128 != 0:
        return m
    t = (max_cols // 128) * 128
    while m % t != 0:
        t -= 128
    return t


def matmul_bias_act(a, b, bias, act):
    """act(a @ b + bias[:, None]).  a: (N, K), b: (K, M), bias: (N,)."""
    n, k = a.shape
    k2, m = b.shape
    assert k == k2
    bias2 = bias.reshape(n, 1).astype(jnp.float32)
    tm = _pick_col_tile(m)
    grid = (m // tm,)
    kernel = functools.partial(_matmul_bias_act_kernel, act=act)
    return pl.pallas_call(
        kernel,
        out_shape=jax.ShapeDtypeStruct((n, m), jnp.float32),
        grid=grid,
        in_specs=[
            pl.BlockSpec((n, k), lambda j: (0, 0)),     # weights stay resident
            pl.BlockSpec((k, tm), lambda j: (0, j)),    # pixel columns stream
            pl.BlockSpec((n, 1), lambda j: (0, 0)),
        ],
        out_specs=pl.BlockSpec((n, tm), lambda j: (0, j)),
        compiler_params=pltpu.CompilerParams(dimension_semantics=("parallel",)),
    )(a.astype(jnp.float32), b.astype(jnp.float32), bias2)


def batchnorm_eval(x, gamma, beta, mean, var, eps=_BN_EPS):
    """Eval-mode BatchNorm2d on NCHW via a per-row affine Pallas kernel."""
    b, c, h, w = x.shape
    scale = (gamma / jnp.sqrt(var + eps)).astype(jnp.float32)
    shift = (beta - mean * scale).astype(jnp.float32)
    xf = x.reshape(b * c, h * w).astype(jnp.float32)
    s = jnp.tile(scale, (b,)).reshape(b * c, 1)
    t = jnp.tile(shift, (b,)).reshape(b * c, 1)
    out = pl.pallas_call(
        _affine_kernel,
        out_shape=jax.ShapeDtypeStruct((b * c, h * w), jnp.float32),
        grid=(1,),
        in_specs=[
            pl.BlockSpec((b * c, h * w), lambda i: (0, 0)),
            pl.BlockSpec((b * c, 1), lambda i: (0, 0)),
            pl.BlockSpec((b * c, 1), lambda i: (0, 0)),
        ],
        out_specs=pl.BlockSpec((b * c, h * w), lambda i: (0, 0)),
    )(xf, s, t)
    return out.reshape(b, c, h, w)


# ----------------------------------------------------------------------------
# Layout helpers (wrapper-side, no compute)
# ----------------------------------------------------------------------------
def _to_cm(x):  # (B, C, H, W) -> (C, B*H*W)
    b, c, h, w = x.shape
    return jnp.transpose(x, (1, 0, 2, 3)).reshape(c, b * h * w)


def _from_cm(y, b, h, w):  # (C, B*H*W) -> (B, C, H, W)
    c = y.shape[0]
    return jnp.transpose(y.reshape(c, b, h, w), (1, 0, 2, 3))


def _im2col_3x3(x):
    """(B, C, H, W) -> (C*9, B*H*W) patches for a 3x3, pad=1 conv."""
    b, c, h, w = x.shape
    xp = jnp.pad(x, ((0, 0), (0, 0), (1, 1), (1, 1)))
    cols = []
    for dy in range(3):
        for dx in range(3):
            cols.append(xp[:, :, dy:dy + h, dx:dx + w])
    p = jnp.stack(cols, axis=2)               # (B, C, 9, H, W)
    p = jnp.transpose(p, (1, 2, 0, 3, 4))     # (C, 9, B, H, W)
    return p.reshape(c * 9, b * h * w)


def _bilinear_matrix(out_size, in_size):
    """PyTorch nn.Upsample(mode='bilinear', align_corners=False) weights."""
    if in_size == out_size:
        return jnp.eye(out_size, dtype=jnp.float32)
    scale = in_size / out_size
    src = (np.arange(out_size) + 0.5) * scale - 0.5
    src = np.clip(src, 0.0, None)
    i0 = np.clip(np.floor(src).astype(np.int64), 0, in_size - 1)
    i1 = np.minimum(i0 + 1, in_size - 1)
    frac = src - i0
    r = np.zeros((out_size, in_size), dtype=np.float32)
    r[np.arange(out_size), i0] += (1.0 - frac)
    r[np.arange(out_size), i1] += frac
    return jnp.asarray(r)


def bilinear_upsample(x, out_h, out_w):
    """Separable bilinear resize as two Pallas matmuls (lane-dense outputs)."""
    b, c, h, w = x.shape
    rh = _bilinear_matrix(out_h, h)
    rw = _bilinear_matrix(out_w, w)
    zero_w = jnp.zeros((out_w,), jnp.float32)
    zero_h = jnp.zeros((out_h,), jnp.float32)
    # Resize along W:  (W_out, W) @ (W, B*C*H)
    xw = jnp.moveaxis(x, 3, 0).reshape(w, b * c * h)
    yw = matmul_bias_act(rw, xw, zero_w, act="none")
    xw2 = jnp.moveaxis(yw.reshape(out_w, b, c, h), 0, 3)      # (B, C, H, W_out)
    # Resize along H:  (H_out, H) @ (H, B*C*W_out)
    xh = jnp.moveaxis(xw2, 2, 0).reshape(h, b * c * out_w)
    yh = matmul_bias_act(rh, xh, zero_h, act="none")
    return jnp.moveaxis(yh.reshape(out_h, b, c, out_w), 0, 2)  # (B,C,H_out,W_out)


# ----------------------------------------------------------------------------
# HRNetV2Skip forward
# ----------------------------------------------------------------------------
def hrnetv2_skip_forward(params, x, spec, *, stem=True, binary_mask=False):
    eps = _BN_EPS
    b, _, h1, w1 = x.shape
    _, _, hs, ws = spec.shape

    # ---- layer1: Conv2d(15W -> W, k=1, padding=1) + BN + ReLU (BN folded) ----
    w1k = params["conv1_w"][:, :, 0, 0]                    # (width, 15*width)
    s1 = params["bn1_gamma"] / jnp.sqrt(params["bn1_var"] + eps)
    w1_eff = w1k * s1[:, None]
    b1_eff = (params["conv1_b"] - params["bn1_mean"]) * s1 + params["bn1_beta"]

    xp = jnp.pad(x, ((0, 0), (0, 0), (1, 1), (1, 1)))      # k=1 conv, padding=1
    h1p, w1p = h1 + 2, w1 + 2
    y1 = matmul_bias_act(w1_eff, _to_cm(xp), b1_eff, act="relu")
    y1 = _from_cm(y1, b, h1p, w1p)                         # (B, width, H+2, W+2)

    # ---- optional stem upsample to spec spatial size (bilinear) ----
    if stem:
        y1 = bilinear_upsample(y1, hs, ws)

    # ---- spec BatchNorm (eval) ----
    spec_n = batchnorm_eval(spec, params["specbn_gamma"], params["specbn_beta"],
                            params["specbn_mean"], params["specbn_var"], eps)

    # ---- concat along channels (layout op) ----
    xcat = jnp.concatenate([y1, spec_n], axis=1)           # (B, width+A, Hs, Ws)

    # ---- layer2: Conv3x3 + ReLU, Conv3x3 + Sigmoid (im2col -> matmul) ----
    w2a, b2a = params["conv2a_w"], params["conv2a_b"]
    ca = xcat.shape[1]
    y2 = matmul_bias_act(w2a.reshape(w2a.shape[0], ca * 9),
                         _im2col_3x3(xcat), b2a, act="relu")
    y2 = _from_cm(y2, b, hs, ws)

    w2b, b2b = params["conv2b_w"], params["conv2b_b"]
    cb = y2.shape[1]
    final_act = "none" if binary_mask else "sigmoid"
    y3 = matmul_bias_act(w2b.reshape(w2b.shape[0], cb * 9),
                         _im2col_3x3(y2), b2b, act=final_act)
    return _from_cm(y3, b, hs, ws)


# ----------------------------------------------------------------------------
# Pure-JAX reference (independent conv path via lax.conv)
# ----------------------------------------------------------------------------
def _reference(params, x, spec, *, stem=True, binary_mask=False):
    eps = _BN_EPS
    dn = ("NCHW", "OIHW", "NCHW")
    hp = jax.lax.Precision.HIGHEST

    y = jax.lax.conv_general_dilated(x, params["conv1_w"], (1, 1),
                                     ((1, 1), (1, 1)), dimension_numbers=dn,
                                     precision=hp)
    y = y + params["conv1_b"][None, :, None, None]
    s1 = params["bn1_gamma"] / jnp.sqrt(params["bn1_var"] + eps)
    y = (y - params["bn1_mean"][None, :, None, None]) * s1[None, :, None, None] \
        + params["bn1_beta"][None, :, None, None]
    y = jnp.maximum(y, 0.0)

    if stem:
        rh = _bilinear_matrix(spec.shape[-2], y.shape[-2])
        rw = _bilinear_matrix(spec.shape[-1], y.shape[-1])
        y = jnp.einsum("oh,bchw,pw->bcop", rh, y, rw, precision=hp)

    ss = params["specbn_gamma"] / jnp.sqrt(params["specbn_var"] + eps)
    sp = (spec - params["specbn_mean"][None, :, None, None]) \
        * ss[None, :, None, None] + params["specbn_beta"][None, :, None, None]

    z = jnp.concatenate([y, sp], axis=1)
    z = jax.lax.conv_general_dilated(z, params["conv2a_w"], (1, 1),
                                     ((1, 1), (1, 1)), dimension_numbers=dn,
                                     precision=hp)
    z = jnp.maximum(z + params["conv2a_b"][None, :, None, None], 0.0)
    z = jax.lax.conv_general_dilated(z, params["conv2b_w"], (1, 1),
                                     ((1, 1), (1, 1)), dimension_numbers=dn,
                                     precision=hp)
    z = z + params["conv2b_b"][None, :, None, None]
    if not binary_mask:
        z = jax.nn.sigmoid(z)
    return z


# ----------------------------------------------------------------------------
if __name__ == "__main__":
    key = jax.random.PRNGKey(0)
    width, num_classes, audio_channels = 8, 2, 2
    batch, h1, w1, hs, ws = 2, 8, 8, 16, 16
    last_inp = 15 * width   # 120

    ks = jax.random.split(key, 16)

    def rnd(k, shape, scale=0.1):
        return jax.random.normal(k, shape, dtype=jnp.float32) * scale

    params = {
        "conv1_w": rnd(ks[0], (width, last_inp, 1, 1)),
        "conv1_b": rnd(ks[1], (width,)),
        "bn1_gamma": 1.0 + 0.1 * jax.random.normal(ks[2], (width,), jnp.float32),
        "bn1_beta": rnd(ks[3], (width,)),
        "bn1_mean": rnd(ks[4], (width,)),
        "bn1_var": 0.5 + jax.random.uniform(ks[5], (width,), jnp.float32),
        "specbn_gamma": 1.0 + 0.1 * jax.random.normal(ks[6], (audio_channels,), jnp.float32),
        "specbn_beta": rnd(ks[7], (audio_channels,)),
        "specbn_mean": rnd(ks[8], (audio_channels,)),
        "specbn_var": 0.5 + jax.random.uniform(ks[9], (audio_channels,), jnp.float32),
        "conv2a_w": rnd(ks[10], (width, width + audio_channels, 3, 3)),
        "conv2a_b": rnd(ks[11], (width,)),
        "conv2b_w": rnd(ks[12], (num_classes * audio_channels, width, 3, 3)),
        "conv2b_b": rnd(ks[13], (num_classes * audio_channels,)),
    }
    x = jax.random.normal(ks[14], (batch, last_inp, h1, w1), dtype=jnp.float32)
    spec = jax.random.normal(ks[15], (batch, audio_channels, hs, ws), dtype=jnp.float32)

    fwd = jax.jit(functools.partial(hrnetv2_skip_forward, stem=True, binary_mask=False))
    out = jax.block_until_ready(fwd(params, x, spec))

    ref = _reference(params, x, spec, stem=True, binary_mask=False)
    assert out.shape == (batch, num_classes * audio_channels, hs, ws), out.shape
    err = float(jnp.max(jnp.abs(out - ref)))
    assert jnp.allclose(out, ref, atol=1e-4, rtol=1e-4), f"mismatch vs reference: {err}"
    print("KERNEL_OK")
</pallas_src>

<mosaic_0001>
module attributes {stable_mosaic.version = 11 : i64} {
  func.func @_matmul_bias_act_kernel(%arg0: i32, %arg1: memref<8x120xf32, #tpu.memory_space<vmem>>, %arg2: memref<120x200xf32, #tpu.memory_space<vmem>>, %arg3: memref<8x1xf32, #tpu.memory_space<vmem>>, %arg4: memref<8x200xf32, #tpu.memory_space<vmem>>) attributes {dimension_semantics = [#tpu.dimension_semantics<parallel>], iteration_bounds = array<i64: 1>, scalar_prefetch = 0 : i64, scratch_operands = 0 : i64, tpu.core_type = #tpu.core_type<tc>, window_params = [{pipeline_mode = #tpu.pipeline_mode<synchronous>, transform_indices = @transform_0, window_bounds = array<i64: 8, 120>}, {transform_indices = @transform_1, window_bounds = array<i64: 120, 200>}, {pipeline_mode = #tpu.pipeline_mode<synchronous>, transform_indices = @transform_2, window_bounds = array<i64: 8, 1>}, {transform_indices = @transform_3, window_bounds = array<i64: 8, 200>}]} {
    %c0 = arith.constant 0 : index
    %c0_0 = arith.constant 0 : index
    %0 = vector.load %arg1[%c0, %c0_0] : memref<8x120xf32, #tpu.memory_space<vmem>>, vector<8x120xf32>
    %c0_1 = arith.constant 0 : index
    %c0_2 = arith.constant 0 : index
    %1 = vector.load %arg2[%c0_1, %c0_2] : memref<120x200xf32, #tpu.memory_space<vmem>>, vector<120x200xf32>
    %cst = arith.constant dense<0.000000e+00> : vector<8x200xf32>
    %2 = tpu.matmul %0, %1, %cst {dimension_numbers = #tpu.dot_dimension_numbers<[1], [0], [0], [1], [0, 0, 1, 1], [], []>} : vector<8x120xf32>, vector<120x200xf32>, vector<8x200xf32> -> vector<8x200xf32>
    %c0_3 = arith.constant 0 : index
    %c0_4 = arith.constant 0 : index
    %3 = vector.load %arg3[%c0_3, %c0_4] : memref<8x1xf32, #tpu.memory_space<vmem>>, vector<8x1xf32>
    %4 = vector.broadcast %3 : vector<8x1xf32> to vector<8x200xf32>
    %5 = arith.addf %2, %4 : vector<8x200xf32>
    %cst_5 = arith.constant 0.000000e+00 : f32
    %6 = vector.broadcast %cst_5 : f32 to vector<8x200xf32>
    %7 = arith.maximumf %5, %6 : vector<8x200xf32>
    %c0_6 = arith.constant 0 : index
    %c0_7 = arith.constant 0 : index
    %8 = vector.load %arg4[%c0_6, %c0_7] : memref<8x200xf32, #tpu.memory_space<vmem>>, vector<8x200xf32>
    tpu.vector_store %arg4[%c0_6, %c0_7], %7 {strides = array<i32>} : memref<8x200xf32, #tpu.memory_space<vmem>>, vector<8x200xf32>,
    return
  }
  func.func @transform_0(%arg0: i32) -> (i32, i32) {
    %c0_i32 = arith.constant 0 : i32
    %c0_i32_0 = arith.constant 0 : i32
    %c0_i32_1 = arith.constant 0 : i32
    return %c0_i32, %c0_i32_0 : i32, i32
  }
  func.func @transform_1(%arg0: i32) -> (i32, i32) {
    %c0_i32 = arith.constant 0 : i32
    %c0_i32_0 = arith.constant 0 : i32
    return %c0_i32, %arg0 : i32, i32
  }
  func.func @transform_2(%arg0: i32) -> (i32, i32) {
    %c0_i32 = arith.constant 0 : i32
    %c0_i32_0 = arith.constant 0 : i32
    %c0_i32_1 = arith.constant 0 : i32
    return %c0_i32, %c0_i32_0 : i32, i32
  }
  func.func @transform_3(%arg0: i32) -> (i32, i32) {
    %c0_i32 = arith.constant 0 : i32
    %c0_i32_0 = arith.constant 0 : i32
    return %c0_i32, %arg0 : i32, i32
  }
}

module attributes {stable_mosaic.version = 11 : i64} {
  func.func @_matmul_bias_act_kernel(%arg0: i32, %arg1: memref<16x10xf32, #tpu.memory_space<vmem>>, %arg2: memref<10x160xf32, #tpu.memory_space<vmem>>, %arg3: memref<16x1xf32, #tpu.memory_space<vmem>>, %arg4: memref<16x160xf32, #tpu.memory_space<vmem>>) attributes {dimension_semantics = [#tpu.dimension_semantics<parallel>], iteration_bounds = array<i64: 1>, scalar_prefetch = 0 : i64, scratch_operands = 0 : i64, tpu.core_type = #tpu.core_type<tc>, window_params = [{pipeline_mode = #tpu.pipeline_mode<synchronous>, transform_indices = @transform_0, window_bounds = array<i64: 16, 10>}, {transform_indices = @transform_1, window_bounds = array<i64: 10, 160>}, {pipeline_mode = #tpu.pipeline_mode<synchronous>, transform_indices = @transform_2, window_bounds = array<i64: 16, 1>}, {transform_indices = @transform_3, window_bounds = array<i64: 16, 160>}]} {
    %c0 = arith.constant 0 : index
    %c0_0 = arith.constant 0 : index
    %0 = vector.load %arg1[%c0, %c0_0] : memref<16x10xf32, #tpu.memory_space<vmem>>, vector<16x10xf32>
    %c0_1 = arith.constant 0 : index
    %c0_2 = arith.constant 0 : index
    %1 = vector.load %arg2[%c0_1, %c0_2] : memref<10x160xf32, #tpu.memory_space<vmem>>, vector<10x160xf32>
    %cst = arith.constant dense<0.000000e+00> : vector<16x160xf32>
    %2 = tpu.matmul %0, %1, %cst {dimension_numbers = #tpu.dot_dimension_numbers<[1], [0], [0], [1], [0, 0, 1, 1], [], []>} : vector<16x10xf32>, vector<10x160xf32>, vector<16x160xf32> -> vector<16x160xf32>
    %c0_3 = arith.constant 0 : index
    %c0_4 = arith.constant 0 : index
    %3 = vector.load %arg3[%c0_3, %c0_4] : memref<16x1xf32, #tpu.memory_space<vmem>>, vector<16x1xf32>
    %4 = vector.broadcast %3 : vector<16x1xf32> to vector<16x160xf32>
    %5 = arith.addf %2, %4 : vector<16x160xf32>
    %c0_5 = arith.constant 0 : index
    %c0_6 = arith.constant 0 : index
    %6 = vector.load %arg4[%c0_5, %c0_6] : memref<16x160xf32, #tpu.memory_space<vmem>>, vector<16x160xf32>
    tpu.vector_store %arg4[%c0_5, %c0_6], %5 {strides = array<i32>} : memref<16x160xf32, #tpu.memory_space<vmem>>, vector<16x160xf32>,
    return
  }
  func.func @transform_0(%arg0: i32) -> (i32, i32) {
    %c0_i32 = arith.constant 0 : i32
    %c0_i32_0 = arith.constant 0 : i32
    %c0_i32_1 = arith.constant 0 : i32
    return %c0_i32, %c0_i32_0 : i32, i32
  }
  func.func @transform_1(%arg0: i32) -> (i32, i32) {
    %c0_i32 = arith.constant 0 : i32
    %c0_i32_0 = arith.constant 0 : i32
    return %c0_i32, %arg0 : i32, i32
  }
  func.func @transform_2(%arg0: i32) -> (i32, i32) {
    %c0_i32 = arith.constant 0 : i32
    %c0_i32_0 = arith.constant 0 : i32
    %c0_i32_1 = arith.constant 0 : i32
    return %c0_i32, %c0_i32_0 : i32, i32
  }
  func.func @transform_3(%arg0: i32) -> (i32, i32) {
    %c0_i32 = arith.constant 0 : i32
    %c0_i32_0 = arith.constant 0 : i32
    return %c0_i32, %arg0 : i32, i32
  }
}

module attributes {stable_mosaic.version = 11 : i64} {
  func.func @_matmul_bias_act_kernel(%arg0: i32, %arg1: memref<16x10xf32, #tpu.memory_space<vmem>>, %arg2: memref<10x256xf32, #tpu.memory_space<vmem>>, %arg3: memref<16x1xf32, #tpu.memory_space<vmem>>, %arg4: memref<16x256xf32, #tpu.memory_space<vmem>>) attributes {dimension_semantics = [#tpu.dimension_semantics<parallel>], iteration_bounds = array<i64: 1>, scalar_prefetch = 0 : i64, scratch_operands = 0 : i64, tpu.core_type = #tpu.core_type<tc>, window_params = [{pipeline_mode = #tpu.pipeline_mode<synchronous>, transform_indices = @transform_0, window_bounds = array<i64: 16, 10>}, {transform_indices = @transform_1, window_bounds = array<i64: 10, 256>}, {pipeline_mode = #tpu.pipeline_mode<synchronous>, transform_indices = @transform_2, window_bounds = array<i64: 16, 1>}, {transform_indices = @transform_3, window_bounds = array<i64: 16, 256>}]} {
    %c0 = arith.constant 0 : index
    %c0_0 = arith.constant 0 : index
    %0 = vector.load %arg1[%c0, %c0_0] : memref<16x10xf32, #tpu.memory_space<vmem>>, vector<16x10xf32>
    %c0_1 = arith.constant 0 : index
    %c0_2 = arith.constant 0 : index
    %1 = vector.load %arg2[%c0_1, %c0_2] : memref<10x256xf32, #tpu.memory_space<vmem>>, vector<10x256xf32>
    %cst = arith.constant dense<0.000000e+00> : vector<16x256xf32>
    %2 = tpu.matmul %0, %1, %cst {dimension_numbers = #tpu.dot_dimension_numbers<[1], [0], [0], [1], [0, 0, 1, 1], [], []>} : vector<16x10xf32>, vector<10x256xf32>, vector<16x256xf32> -> vector<16x256xf32>
    %c0_3 = arith.constant 0 : index
    %c0_4 = arith.constant 0 : index
    %3 = vector.load %arg3[%c0_3, %c0_4] : memref<16x1xf32, #tpu.memory_space<vmem>>, vector<16x1xf32>
    %4 = vector.broadcast %3 : vector<16x1xf32> to vector<16x256xf32>
    %5 = arith.addf %2, %4 : vector<16x256xf32>
    %c0_5 = arith.constant 0 : index
    %c0_6 = arith.constant 0 : index
    %6 = vector.load %arg4[%c0_5, %c0_6] : memref<16x256xf32, #tpu.memory_space<vmem>>, vector<16x256xf32>
    tpu.vector_store %arg4[%c0_5, %c0_6], %5 {strides = array<i32>} : memref<16x256xf32, #tpu.memory_space<vmem>>, vector<16x256xf32>,
    return
  }
  func.func @transform_0(%arg0: i32) -> (i32, i32) {
    %c0_i32 = arith.constant 0 : i32
    %c0_i32_0 = arith.constant 0 : i32
    %c0_i32_1 = arith.constant 0 : i32
    return %c0_i32, %c0_i32_0 : i32, i32
  }
  func.func @transform_1(%arg0: i32) -> (i32, i32) {
    %c0_i32 = arith.constant 0 : i32
    %c0_i32_0 = arith.constant 0 : i32
    return %c0_i32, %arg0 : i32, i32
  }
  func.func @transform_2(%arg0: i32) -> (i32, i32) {
    %c0_i32 = arith.constant 0 : i32
    %c0_i32_0 = arith.constant 0 : i32
    %c0_i32_1 = arith.constant 0 : i32
    return %c0_i32, %c0_i32_0 : i32, i32
  }
  func.func @transform_3(%arg0: i32) -> (i32, i32) {
    %c0_i32 = arith.constant 0 : i32
    %c0_i32_0 = arith.constant 0 : i32
    return %c0_i32, %arg0 : i32, i32
  }
}

module attributes {stable_mosaic.version = 11 : i64} {
  func.func @_affine_kernel(%arg0: i32, %arg1: memref<4x256xf32, #tpu.memory_space<vmem>>, %arg2: memref<4x1xf32, #tpu.memory_space<vmem>>, %arg3: memref<4x1xf32, #tpu.memory_space<vmem>>, %arg4: memref<4x256xf32, #tpu.memory_space<vmem>>) attributes {dimension_semantics = [#tpu.dimension_semantics<arbitrary>], iteration_bounds = array<i64: 1>, scalar_prefetch = 0 : i64, scratch_operands = 0 : i64, tpu.core_type = #tpu.core_type<tc>, window_params = [{pipeline_mode = #tpu.pipeline_mode<synchronous>, transform_indices = @transform_0, window_bounds = array<i64: 4, 256>}, {pipeline_mode = #tpu.pipeline_mode<synchronous>, transform_indices = @transform_1, window_bounds = array<i64: 4, 1>}, {pipeline_mode = #tpu.pipeline_mode<synchronous>, transform_indices = @transform_2, window_bounds = array<i64: 4, 1>}, {pipeline_mode = #tpu.pipeline_mode<synchronous>, transform_indices = @transform_3, window_bounds = array<i64: 4, 256>}]} {
    %c0 = arith.constant 0 : index
    %c0_0 = arith.constant 0 : index
    %0 = vector.load %arg1[%c0, %c0_0] : memref<4x256xf32, #tpu.memory_space<vmem>>, vector<4x256xf32>
    %c0_1 = arith.constant 0 : index
    %c0_2 = arith.constant 0 : index
    %1 = vector.load %arg2[%c0_1, %c0_2] : memref<4x1xf32, #tpu.memory_space<vmem>>, vector<4x1xf32>
    %2 = vector.broadcast %1 : vector<4x1xf32> to vector<4x256xf32>
    %3 = arith.mulf %0, %2 : vector<4x256xf32>
    %c0_3 = arith.constant 0 : index
    %c0_4 = arith.constant 0 : index
    %4 = vector.load %arg3[%c0_3, %c0_4] : memref<4x1xf32, #tpu.memory_space<vmem>>, vector<4x1xf32>
    %5 = vector.broadcast %4 : vector<4x1xf32> to vector<4x256xf32>
    %6 = arith.addf %3, %5 : vector<4x256xf32>
    %c0_5 = arith.constant 0 : index
    %c0_6 = arith.constant 0 : index
    %7 = vector.load %arg4[%c0_5, %c0_6] : memref<4x256xf32, #tpu.memory_space<vmem>>, vector<4x256xf32>
    tpu.vector_store %arg4[%c0_5, %c0_6], %6 {strides = array<i32>} : memref<4x256xf32, #tpu.memory_space<vmem>>, vector<4x256xf32>,
    return
  }
  func.func @transform_0(%arg0: i32) -> (i32, i32) {
    %c0_i32 = arith.constant 0 : i32
    %c0_i32_0 = arith.constant 0 : i32
    %c0_i32_1 = arith.constant 0 : i32
    return %c0_i32, %c0_i32_0 : i32, i32
  }
  func.func @transform_1(%arg0: i32) -> (i32, i32) {
    %c0_i32 = arith.constant 0 : i32
    %c0_i32_0 = arith.constant 0 : i32
    %c0_i32_1 = arith.constant 0 : i32
    return %c0_i32, %c0_i32_0 : i32, i32
  }
  func.func @transform_2(%arg0: i32) -> (i32, i32) {
    %c0_i32 = arith.constant 0 : i32
    %c0_i32_0 = arith.constant 0 : i32
    %c0_i32_1 = arith.constant 0 : i32
    return %c0_i32, %c0_i32_0 : i32, i32
  }
  func.func @transform_3(%arg0: i32) -> (i32, i32) {
    %c0_i32 = arith.constant 0 : i32
    %c0_i32_0 = arith.constant 0 : i32
    %c0_i32_1 = arith.constant 0 : i32
    return %c0_i32, %c0_i32_0 : i32, i32
  }
}

module attributes {stable_mosaic.version = 11 : i64} {
  func.func @_matmul_bias_act_kernel(%arg0: i32, %arg1: memref<8x90xf32, #tpu.memory_space<vmem>>, %arg2: memref<90x512xf32, #tpu.memory_space<vmem>>, %arg3: memref<8x1xf32, #tpu.memory_space<vmem>>, %arg4: memref<8x512xf32, #tpu.memory_space<vmem>>) attributes {dimension_semantics = [#tpu.dimension_semantics<parallel>], iteration_bounds = array<i64: 1>, scalar_prefetch = 0 : i64, scratch_operands = 0 : i64, tpu.core_type = #tpu.core_type<tc>, window_params = [{pipeline_mode = #tpu.pipeline_mode<synchronous>, transform_indices = @transform_0, window_bounds = array<i64: 8, 90>}, {transform_indices = @transform_1, window_bounds = array<i64: 90, 512>}, {pipeline_mode = #tpu.pipeline_mode<synchronous>, transform_indices = @transform_2, window_bounds = array<i64: 8, 1>}, {transform_indices = @transform_3, window_bounds = array<i64: 8, 512>}]} {
    %c0 = arith.constant 0 : index
    %c0_0 = arith.constant 0 : index
    %0 = vector.load %arg1[%c0, %c0_0] : memref<8x90xf32, #tpu.memory_space<vmem>>, vector<8x90xf32>
    %c0_1 = arith.constant 0 : index
    %c0_2 = arith.constant 0 : index
    %1 = vector.load %arg2[%c0_1, %c0_2] : memref<90x512xf32, #tpu.memory_space<vmem>>, vector<90x512xf32>
    %cst = arith.constant dense<0.000000e+00> : vector<8x512xf32>
    %2 = tpu.matmul %0, %1, %cst {dimension_numbers = #tpu.dot_dimension_numbers<[1], [0], [0], [1], [0, 0, 1, 1], [], []>} : vector<8x90xf32>, vector<90x512xf32>, vector<8x512xf32> -> vector<8x512xf32>
    %c0_3 = arith.constant 0 : index
    %c0_4 = arith.constant 0 : index
    %3 = vector.load %arg3[%c0_3, %c0_4] : memref<8x1xf32, #tpu.memory_space<vmem>>, vector<8x1xf32>
    %4 = vector.broadcast %3 : vector<8x1xf32> to vector<8x512xf32>
    %5 = arith.addf %2, %4 : vector<8x512xf32>
    %cst_5 = arith.constant 0.000000e+00 : f32
    %6 = vector.broadcast %cst_5 : f32 to vector<8x512xf32>
    %7 = arith.maximumf %5, %6 : vector<8x512xf32>
    %c0_6 = arith.constant 0 : index
    %c0_7 = arith.constant 0 : index
    %8 = vector.load %arg4[%c0_6, %c0_7] : memref<8x512xf32, #tpu.memory_space<vmem>>, vector<8x512xf32>
    tpu.vector_store %arg4[%c0_6, %c0_7], %7 {strides = array<i32>} : memref<8x512xf32, #tpu.memory_space<vmem>>, vector<8x512xf32>,
    return
  }
  func.func @transform_0(%arg0: i32) -> (i32, i32) {
    %c0_i32 = arith.constant 0 : i32
    %c0_i32_0 = arith.constant 0 : i32
    %c0_i32_1 = arith.constant 0 : i32
    return %c0_i32, %c0_i32_0 : i32, i32
  }
  func.func @transform_1(%arg0: i32) -> (i32, i32) {
    %c0_i32 = arith.constant 0 : i32
    %c0_i32_0 = arith.constant 0 : i32
    return %c0_i32, %arg0 : i32, i32
  }
  func.func @transform_2(%arg0: i32) -> (i32, i32) {
    %c0_i32 = arith.constant 0 : i32
    %c0_i32_0 = arith.constant 0 : i32
    %c0_i32_1 = arith.constant 0 : i32
    return %c0_i32, %c0_i32_0 : i32, i32
  }
  func.func @transform_3(%arg0: i32) -> (i32, i32) {
    %c0_i32 = arith.constant 0 : i32
    %c0_i32_0 = arith.constant 0 : i32
    return %c0_i32, %arg0 : i32, i32
  }
}

module attributes {stable_mosaic.version = 11 : i64} {
  func.func @_matmul_bias_act_kernel(%arg0: i32, %arg1: memref<4x72xf32, #tpu.memory_space<vmem>>, %arg2: memref<72x512xf32, #tpu.memory_space<vmem>>, %arg3: memref<4x1xf32, #tpu.memory_space<vmem>>, %arg4: memref<4x512xf32, #tpu.memory_space<vmem>>) attributes {dimension_semantics = [#tpu.dimension_semantics<parallel>], iteration_bounds = array<i64: 1>, scalar_prefetch = 0 : i64, scratch_operands = 0 : i64, tpu.core_type = #tpu.core_type<tc>, window_params = [{pipeline_mode = #tpu.pipeline_mode<synchronous>, transform_indices = @transform_0, window_bounds = array<i64: 4, 72>}, {transform_indices = @transform_1, window_bounds = array<i64: 72, 512>}, {pipeline_mode = #tpu.pipeline_mode<synchronous>, transform_indices = @transform_2, window_bounds = array<i64: 4, 1>}, {transform_indices = @transform_3, window_bounds = array<i64: 4, 512>}]} {
    %c0 = arith.constant 0 : index
    %c0_0 = arith.constant 0 : index
    %0 = vector.load %arg1[%c0, %c0_0] : memref<4x72xf32, #tpu.memory_space<vmem>>, vector<4x72xf32>
    %c0_1 = arith.constant 0 : index
    %c0_2 = arith.constant 0 : index
    %1 = vector.load %arg2[%c0_1, %c0_2] : memref<72x512xf32, #tpu.memory_space<vmem>>, vector<72x512xf32>
    %cst = arith.constant dense<0.000000e+00> : vector<4x512xf32>
    %2 = tpu.matmul %0, %1, %cst {dimension_numbers = #tpu.dot_dimension_numbers<[1], [0], [0], [1], [0, 0, 1, 1], [], []>} : vector<4x72xf32>, vector<72x512xf32>, vector<4x512xf32> -> vector<4x512xf32>
    %c0_3 = arith.constant 0 : index
    %c0_4 = arith.constant 0 : index
    %3 = vector.load %arg3[%c0_3, %c0_4] : memref<4x1xf32, #tpu.memory_space<vmem>>, vector<4x1xf32>
    %4 = vector.broadcast %3 : vector<4x1xf32> to vector<4x512xf32>
    %5 = arith.addf %2, %4 : vector<4x512xf32>
    %cst_5 = arith.constant 0.000000e+00 : f32
    %6 = vector.broadcast %cst_5 : f32 to vector<4x512xf32>
    %7 = arith.subf %6, %5 : vector<4x512xf32>
    %8 = math.exp %7 : vector<4x512xf32>
    %cst_6 = arith.constant 1.000000e+00 : f32
    %9 = vector.broadcast %cst_6 : f32 to vector<4x512xf32>
    %10 = arith.addf %9, %8 : vector<4x512xf32>
    %cst_7 = arith.constant 1.000000e+00 : f32
    %11 = vector.broadcast %cst_7 : f32 to vector<4x512xf32>
    %12 = arith.divf %11, %10 : vector<4x512xf32>
    %c0_8 = arith.constant 0 : index
    %c0_9 = arith.constant 0 : index
    %13 = vector.load %arg4[%c0_8, %c0_9] : memref<4x512xf32, #tpu.memory_space<vmem>>, vector<4x512xf32>
    tpu.vector_store %arg4[%c0_8, %c0_9], %12 {strides = array<i32>} : memref<4x512xf32, #tpu.memory_space<vmem>>, vector<4x512xf32>,
    return
  }
  func.func @transform_0(%arg0: i32) -> (i32, i32) {
    %c0_i32 = arith.constant 0 : i32
    %c0_i32_0 = arith.constant 0 : i32
    %c0_i32_1 = arith.constant 0 : i32
    return %c0_i32, %c0_i32_0 : i32, i32
  }
  func.func @transform_1(%arg0: i32) -> (i32, i32) {
    %c0_i32 = arith.constant 0 : i32
    %c0_i32_0 = arith.constant 0 : i32
    return %c0_i32, %arg0 : i32, i32
  }
  func.func @transform_2(%arg0: i32) -> (i32, i32) {
    %c0_i32 = arith.constant 0 : i32
    %c0_i32_0 = arith.constant 0 : i32
    %c0_i32_1 = arith.constant 0 : i32
    return %c0_i32, %c0_i32_0 : i32, i32
  }
  func.func @transform_3(%arg0: i32) -> (i32, i32) {
    %c0_i32 = arith.constant 0 : i32
    %c0_i32_0 = arith.constant 0 : i32
    return %c0_i32, %arg0 : i32, i32
  }
}

</mosaic_0001>

<llo_original>
// kernel: hrnetv2_skip_forward.6
$region0: #{hrnetv2_skip_forward.6}
  #allocation0 [shape = 'u32[]', space=smem, size = 0x4, offset = 0x4, fixed_abs, tag = 'smem constant byte address 0x4 - core index']
  #allocation1 [shape = 'u32[144,128]{1,0:T(1,128)}', space=vmem, size = 0x12000, scoped, tag = 'internal scratch']
  %s0 = inlined_call_operand.vmem [shape: f32[8,120], index: 0, kind: input, shape index: {}]
  %s1 = inlined_call_operand.vmem [shape: f32[120,200], index: 1, kind: input, shape index: {}]
  %s2 = inlined_call_operand.vmem [shape: f32[8,1], index: 2, kind: input, shape index: {}]
  %s3 = inlined_call_operand.vmem [shape: f32[8,200], index: 3, kind: output, shape index: {}]
  %s4 = sld [smem:[#allocation0]]
  $region22: #{hrnetv2_skip_forward.6} parent=0
    _
  %s6 = ssub.s32 1, %s4
  %s7 = scalar_select 0, %s6, %s4
  // Predicated region
  $region2: #{hrnetv2_skip_forward.6} parent=0 // pred_check
    _
  $region3: #{hrnetv2_skip_forward.6} parent=0 // pred_check_branch
    %9 = sbr.rel (0) target = $region5
  $region4: #{hrnetv2_skip_forward.6} parent=0 // pred_region
    _
  $region5: #{hrnetv2_skip_forward.6} parent=0 // pred_fallthru
    _
  // Predicated region
  $region6: #{hrnetv2_skip_forward.6} parent=0 // pred_check
    _
  $region7: #{hrnetv2_skip_forward.6} parent=0 // pred_check_branch
    %11 = sbr.rel (0) target = $region9
  $region8: #{hrnetv2_skip_forward.6} parent=0 // pred_region
    _
  $region9: #{hrnetv2_skip_forward.6} parent=0 // pred_fallthru
    _
  // Predicated region
  $region10: #{hrnetv2_skip_forward.6} parent=0 // pred_check
    _
  $region11: #{hrnetv2_skip_forward.6} parent=0 // pred_check_branch
    %13 = sbr.rel (0) target = $region13
  $region12: #{hrnetv2_skip_forward.6} parent=0 // pred_region
    _
  $region13: #{hrnetv2_skip_forward.6} parent=0 // pred_fallthru
    _
  %v14 = vld [vmem:[%s0] sm:$0xff]
  %v15 = vld [vmem:[%s1] sm:$0xff]
  %v16 = vld [vmem:[%s1 + $0x8] sm:$0xff]
  %v17 = vld [vmem:[%s1 + $0x10] sm:$0xff]
  %v18 = vld [vmem:[%s1 + $0x18] sm:$0xff]
  %v19 = vld [vmem:[%s1 + $0x20] sm:$0xff]
  %v20 = vld [vmem:[%s1 + $0x28] sm:$0xff]
  %v21 = vld [vmem:[%s1 + $0x30] sm:$0xff]
  %v22 = vld [vmem:[%s1 + $0x38] sm:$0xff]
  %v23 = vld [vmem:[%s1 + $0x40] sm:$0xff]
  %v24 = vld [vmem:[%s1 + $0x48] sm:$0xff]
  %v25 = vld [vmem:[%s1 + $0x50] sm:$0xff]
  %v26 = vld [vmem:[%s1 + $0x58] sm:$0xff]
  %v27 = vld [vmem:[%s1 + $0x60] sm:$0xff]
  %v28 = vld [vmem:[%s1 + $0x68] sm:$0xff]
  %v29 = vld [vmem:[%s1 + $0x70] sm:$0xff]
  %v30 = vld [vmem:[%s1 + $0x78] sm:$0xff]
  %v31 = vld [vmem:[%s1 + $0x80] sm:$0xff]
  %v32 = vld [vmem:[%s1 + $0x88] sm:$0xff]
  %v33 = vld [vmem:[%s1 + $0x90] sm:$0xff]
  %v34 = vld [vmem:[%s1 + $0x98] sm:$0xff]
  %v35 = vld [vmem:[%s1 + $0xa0] sm:$0xff]
  %v36 = vld [vmem:[%s1 + $0xa8] sm:$0xff]
  %v37 = vld [vmem:[%s1 + $0xb0] sm:$0xff]
  %v38 = vld [vmem:[%s1 + $0xb8] sm:$0xff]
  %v39 = vld [vmem:[%s1 + $0xc0] sm:$0xff]
  %v40 = vld [vmem:[%s1 + $0xc8] sm:$0xff]
  %v41 = vld [vmem:[%s1 + $0xd0] sm:$0xff]
  %v42 = vld [vmem:[%s1 + $0xd8] sm:$0xff]
  %v43 = vld [vmem:[%s1 + $0xe0] sm:$0xff]
  %v44 = vld [vmem:[%s1 + $0xe8] sm:$0xff]
  %v45 = vld [vmem:[%s2] sm:$0xff]
  %47 = vset.pattern.permute.xlu0 0
  %48 = vperm.xlu0 %47, %v45
  %v49 = vpop.permute.xlu0 %48
  %vm51 = vcmask 982016
  %v53 = vsel %vm51, %v14, 0
  %55 = vmatprep.subr.mxu0 %v16
  %56 = vmatpush1.msra.mxu0 %v15
  %57 = vmatprep.subr.mxu0 %v18
  %58 = vmatpush1.msra.mxu0 %v17
  %59 = vmatprep.subr.mxu0 %v20
  %60 = vmatpush1.msra.mxu0 %v19
  %61 = vmatprep.subr.mxu0 %v22
  %62 = vmatpush1.msra.mxu0 %v21
  %63 = vmatprep.subr.mxu0 %v24
  %64 = vmatpush1.msra.mxu0 %v23
  %65 = vmatprep.subr.mxu0 %v26
  %66 = vmatpush1.msra.mxu0 %v25
  %67 = vmatprep.subr.mxu0 %v28
  %68 = vmatpush1.msra.mxu0 %v27
  %69 = vmatprep.subr.mxu0 %v30
  %70 = vmatpush1.msra.mxu0 %v29
  %71 = vmatprep.subr.mxu0 %v32
  %72 = vmatpush1.msra.mxu0 %v31
  %73 = vmatprep.subr.mxu0 %v34
  %74 = vmatpush1.msra.mxu0 %v33
  %75 = vmatprep.subr.mxu0 %v36
  %76 = vmatpush1.msra.mxu0 %v35
  %77 = vmatprep.subr.mxu0 %v38
  %78 = vmatpush1.msra.mxu0 %v37
  %79 = vmatprep.subr.mxu0 %v40
  %80 = vmatpush1.msra.mxu0 %v39
  %81 = vmatprep.subr.mxu0 %v42
  %82 = vmatpush1.msra.mxu0 %v41
  %83 = vmatprep.subr.mxu0 %v44
  %84 = vmatpush1.msra.mxu0 %v43
  %85 = vmatprep.subr.mxu0 0.0
  %86 = vmatpush1.msra.mxu0 0.0
  %87 = vmatprep.subr.mxu0 0.0
  %88 = vmatpush1.msra.mxu0 0.0
  %89 = vmatprep.subr.mxu0 0.0
  %90 = vmatpush1.msra.mxu0 0.0
  %91 = vmatprep.subr.mxu0 0.0
  %92 = vmatpush1.msra.mxu0 0.0
  %93 = vmatprep.subr.mxu0 0.0
  %94 = vmatpush1.msra.mxu0 0.0
  %95 = vmatprep.subr.mxu0 0.0
  %96 = vmatpush1.msra.mxu0 0.0
  %97 = vmatprep.subr.mxu0 0.0
  %98 = vmatpush1.msra.mxu0 0.0
  %99 = vmatprep.subr.mxu0 0.0
  %100 = vmatpush1.msra.mxu0 0.0
  %101 = vmatprep.subr.mxu0 0.0
  %102 = vmatpush1.msra.mxu0 0.0
  %103 = vmatprep.subr.mxu0 0.0
  %104 = vmatpush1.msra.mxu0 0.0
  %105 = vmatprep.subr.mxu0 0.0
  %106 = vmatpush1.msra.mxu0 0.0
  %107 = vmatprep.subr.mxu0 0.0
  %108 = vmatpush1.msra.mxu0 0.0
  %109 = vmatprep.subr.mxu0 0.0
  %110 = vmatpush1.msra.mxu0 0.0
  %111 = vmatprep.subr.mxu0 0.0
  %112 = vmatpush1.msra.mxu0 0.0
  %113 = vmatprep.subr.mxu0 0.0
  %114 = vmatpush1.msra.mxu0 0.0
  %115 = vmatprep.subr.mxu0 0.0
  %116 = vmatpush1.msra.mxu0 0.0
  %117 = vmatprep.subr.mxu0 0.0
  %118 = vmatpush1.msra.mxu0 0.0
  %119 = vmatprep.mubr.f32.mxu0 0.0
  %120 = vmatmul.mubr.f32.gmra.mrb[0].mxu0 %v53
  %v121 = vpop.f32.mrb[0].mxu0
  %v122 = vadd.f32 %v49, %v121
  %v123 = vpop.f32.mrb[0].mxu0
  %v124 = vadd.f32 %v49, %v123
  %125 = vdwg.mxu0
  %v126 = vmax.f32 %v122, 0.0
  %v127 = vmax.f32 %v124, 0.0
  %128 = vst [vmem:[%s3] sm:$0xff] %v126
  %vm129 = vcmask 588800
  %130 = vst.msk [vmem:[%s3 + $0x8] sm:$0xff] %vm129, %v127
  // Predicated region
  $region14: #{hrnetv2_skip_forward.6} parent=0 // pred_check
    _
  $region15: #{hrnetv2_skip_forward.6} parent=0 // pred_check_branch
    %132 = sbr.rel (0) target = $region17
  $region16: #{hrnetv2_skip_forward.6} parent=0 // pred_region
    _
  $region17: #{hrnetv2_skip_forward.6} parent=0 // pred_fallthru
    _
  // Predicated region
  $region18: #{hrnetv2_skip_forward.6} parent=0 // pred_check
    _
  $region19: #{hrnetv2_skip_forward.6} parent=0 // pred_check_branch
    %134 = sbr.rel (0) target = $region21
  $region20: #{hrnetv2_skip_forward.6} parent=0 // pred_region
    _
  $region21: #{hrnetv2_skip_forward.6} parent=0 // pred_fallthru
    _

// kernel: hrnetv2_skip_forward.7
$region0: #{hrnetv2_skip_forward.7}
  #allocation0 [shape = 'u32[]', space=smem, size = 0x4, offset = 0x4, fixed_abs, tag = 'smem constant byte address 0x4 - core index']
  #allocation1 [shape = 'u32[144,128]{1,0:T(1,128)}', space=vmem, size = 0x12000, scoped, tag = 'internal scratch']
  %s0 = inlined_call_operand.hbm [shape: f32[16,10], index: 0, kind: input, shape index: {}]
  %s1 = inlined_call_operand.vmem [shape: f32[10,160], index: 1, kind: input, shape index: {}]
  %s2 = inlined_call_operand.vmem [shape: f32[16,1], index: 2, kind: input, shape index: {}]
  %s3 = inlined_call_operand.vmem [shape: f32[16,160], index: 3, kind: output, shape index: {}]
  %s4 = sld [smem:[#allocation0]]
  $region26: #{hrnetv2_skip_forward.7} parent=0
    _
  %s6 = ssub.s32 1, %s4
  %s7 = scalar_select 0, %s6, %s4
  $region1: #{hrnetv2_skip_forward.7} parent=0
    #allocation2 [shape = 'u8[8192]{0}', space=vmem, size = 0x2000, scoped, tag = 'input window, operand 0, single buffered']
    #allocation3 [shape = 's32[1]{0}', space=sflag, size = 0x4, scoped, tag = 'scoped memory for hrnetv2_skip_forward.7']
    %8 = vsyncpa [#allocation3], 0
    // Predicated region
    $region2: #{hrnetv2_skip_forward.7} parent=1 // pred_check
      _
    $region3: #{hrnetv2_skip_forward.7} parent=1 // pred_check_branch
      %10 = sbr.rel (0) target = $region5
    $region4: #{hrnetv2_skip_forward.7} parent=1 // pred_region
      %s12 = ssub.s32 256, 256
      %13 = vsyncadd [#allocation3], %s12
      %s14 = sshll.u32 [#allocation2], 4
      %s15 = int_to_ptr.vmem [resolvable:$true] %s14
      %20 = dma.hbm_to_vmem [thread:$0]  %s0, 256, %s15, [#allocation3], 128, 128, 8
    $region5: #{hrnetv2_skip_forward.7} parent=1 // pred_fallthru
      _
    // Predicated region
    $region6: #{hrnetv2_skip_forward.7} parent=1 // pred_check
      _
    $region7: #{hrnetv2_skip_forward.7} parent=1 // pred_check_branch
      %22 = sbr.rel (0) target = $region9
    $region8: #{hrnetv2_skip_forward.7} parent=1 // pred_region
      _
    $region9: #{hrnetv2_skip_forward.7} parent=1 // pred_fallthru
      _
    // Predicated region
    $region10: #{hrnetv2_skip_forward.7} parent=1 // pred_check
      _
    $region11: #{hrnetv2_skip_forward.7} parent=1 // pred_check_branch
      %24 = sbr.rel (0) target = $region13
    $region12: #{hrnetv2_skip_forward.7} parent=1 // pred_region
      _
    $region13: #{hrnetv2_skip_forward.7} parent=1 // pred_fallthru
      _
    // Predicated region
    $region14: #{hrnetv2_skip_forward.7} parent=1 // pred_check
      _
    $region15: #{hrnetv2_skip_forward.7} parent=1 // pred_check_branch
      %26 = sbr.rel (0) target = $region17
    $region16: #{hrnetv2_skip_forward.7} parent=1 // pred_region
      %27 = dma.done [#allocation3], 256
    $region17: #{hrnetv2_skip_forward.7} parent=1 // pred_fallthru
      _
    %v28 = vld [vmem:[#allocation2] sm:$0xff]
    %v29 = vld [vmem:[#allocation2 + $0x8] sm:$0xff]
    %v30 = vld [vmem:[%s1] sm:$0xff]
    %v31 = vld [vmem:[%s1 + $0x8] sm:$0xff]
    %v32 = vld [vmem:[%s1 + $0x10] sm:$0x3]
    %v33 = vld [vmem:[%s1 + $0x18] sm:$0x3]
    %v34 = vld [vmem:[%s2] sm:$0xff]
    %v35 = vld [vmem:[%s2 + $0x8] sm:$0xff]
    %37 = vset.pattern.permute.xlu0 0
    %38 = vperm.xlu0 %37, %v34
    %v39 = vpop.permute.xlu0 %38
    %42 = vset.pattern.permute.xlu0 0
    %43 = vperm.xlu0 %42, %v35
    %v44 = vpop.permute.xlu0 %43
    %vm46 = vcmask 80896
    %v48 = vsel %vm46, %v28, 0
    %v51 = vsel %vm46, %v29, 0
    %vm53 = vcmask 1041408
    %v55 = vsel %vm53, %v32, 0
    %v58 = vsel %vm53, %v33, 0
    %60 = vmatprep.subr.mxu0 %v31
    %61 = vmatpush1.msra.mxu0 %v30
    %62 = vmatprep.subr.mxu0 %v58
    %63 = vmatpush1.msra.mxu0 %v55
    %64 = vmatprep.subr.mxu0 0.0
    %65 = vmatpush1.msra.mxu0 0.0
    %66 = vmatprep.subr.mxu0 0.0
    %67 = vmatpush1.msra.mxu0 0.0
    %68 = vmatprep.subr.mxu0 0.0
    %69 = vmatpush1.msra.mxu0 0.0
    %70 = vmatprep.subr.mxu0 0.0
    %71 = vmatpush1.msra.mxu0 0.0
    %72 = vmatprep.subr.mxu0 0.0
    %73 = vmatpush1.msra.mxu0 0.0
    %74 = vmatprep.subr.mxu0 0.0
    %75 = vmatpush1.msra.mxu0 0.0
    %76 = vmatprep.subr.mxu0 0.0
    %77 = vmatpush1.msra.mxu0 0.0
    %78 = vmatprep.subr.mxu0 0.0
    %79 = vmatpush1.msra.mxu0 0.0
    %80 = vmatprep.subr.mxu0 0.0
    %81 = vmatpush1.msra.mxu0 0.0
    %82 = vmatprep.subr.mxu0 0.0
    %83 = vmatpush1.msra.mxu0 0.0
    %84 = vmatprep.subr.mxu0 0.0
    %85 = vmatpush1.msra.mxu0 0.0
    %86 = vmatprep.subr.mxu0 0.0
    %87 = vmatpush1.msra.mxu0 0.0
    %88 = vmatprep.subr.mxu0 0.0
    %89 = vmatpush1.msra.mxu0 0.0
    %90 = vmatprep.subr.mxu0 0.0
    %91 = vmatpush1.msra.mxu0 0.0
    %92 = vmatprep.subr.mxu0 0.0
    %93 = vmatpush1.msra.mxu0 0.0
    %94 = vmatprep.subr.mxu0 0.0
    %95 = vmatpush1.msra.mxu0 0.0
    %96 = vmatprep.subr.mxu0 0.0
    %97 = vmatpush1.msra.mxu0 0.0
    %98 = vmatprep.subr.mxu0 0.0
    %99 = vmatpush1.msra.mxu0 0.0
    %100 = vmatprep.subr.mxu0 0.0
    %101 = vmatpush1.msra.mxu0 0.0
    %102 = vmatprep.subr.mxu0 0.0
    %103 = vmatpush1.msra.mxu0 0.0
    %104 = vmatprep.subr.mxu0 0.0
    %105 = vmatpush1.msra.mxu0 0.0
    %106 = vmatprep.subr.mxu0 0.0
    %107 = vmatpush1.msra.mxu0 0.0
    %108 = vmatprep.subr.mxu0 0.0
    %109 = vmatpush1.msra.mxu0 0.0
    %110 = vmatprep.subr.mxu0 0.0
    %111 = vmatpush1.msra.mxu0 0.0
    %112 = vmatprep.subr.mxu0 0.0
    %113 = vmatpush1.msra.mxu0 0.0
    %114 = vmatprep.subr.mxu0 0.0
    %115 = vmatpush1.msra.mxu0 0.0
    %116 = vmatprep.subr.mxu0 0.0
    %117 = vmatpush1.msra.mxu0 0.0
    %118 = vmatprep.subr.mxu0 0.0
    %119 = vmatpush1.msra.mxu0 0.0
    %120 = vmatprep.subr.mxu0 0.0
    %121 = vmatpush1.msra.mxu0 0.0
    %122 = vmatprep.subr.mxu0 0.0
    %123 = vmatpush1.msra.mxu0 0.0
    %124 = vmatprep.mubr.f32.mxu0 0.0
    %125 = vmatmul.mubr.f32.gmra.mrb[0].mxu0 %v48
    %v126 = vpop.f32.mrb[0].mxu0
    %v127 = vadd.f32 %v39, %v126
    %v128 = vpop.f32.mrb[0].mxu0
    %v129 = vadd.f32 %v39, %v128
    %130 = vmatprep.mubr.f32.mxu0 0.0
    %131 = vmatmul.mubr.f32.gmra.mrb[0].mxu0 %v51
    %v132 = vpop.f32.mrb[0].mxu0
    %v133 = vadd.f32 %v44, %v132
    %v134 = vpop.f32.mrb[0].mxu0
    %v135 = vadd.f32 %v44, %v134
    %136 = vdwg.mxu0
    %137 = vst [vmem:[%s3] sm:$0xff] %v127
    %vm138 = vcmask 261120
    %139 = vst.msk [vmem:[%s3 + $0x8] sm:$0xff] %vm138, %v129
    %140 = vst [vmem:[%s3 + $0x10] sm:$0xff] %v133
    %141 = vst.msk [vmem:[%s3 + $0x18] sm:$0xff] %vm138, %v135
    // Predicated region
    $region18: #{hrnetv2_skip_forward.7} parent=1 // pred_check
      _
    $region19: #{hrnetv2_skip_forward.7} parent=1 // pred_check_branch
      %143 = sbr.rel (0) target = $region21
    $region20: #{hrnetv2_skip_forward.7} parent=1 // pred_region
      _
    $region21: #{hrnetv2_skip_forward.7} parent=1 // pred_fallthru
      _
    // Predicated region
    $region22: #{hrnetv2_skip_forward.7} parent=1 // pred_check
      _
    $region23: #{hrnetv2_skip_forward.7} parent=1 // pred_check_branch
      %145 = sbr.rel (0) target = $region25
    $region24: #{hrnetv2_skip_forward.7} parent=1 // pred_region
      _
    $region25: #{hrnetv2_skip_forward.7} parent=1 // pred_fallthru
      _
    %146 = vsyncpa [#allocation3], 1

// kernel: tile.13
$region0: #{tile.13}
  #allocation0 [shape = 's32[1]{0}', space=sflag, size = 0x4, scoped, tag = 'scoped memory for tile.13']
  %s0 = inlined_call_operand.vmem [shape: f32[2], index: 0, kind: input, shape index: {}]
  %s1 = inlined_call_operand.vmem [shape: f32[2,2], index: 1, kind: output, shape index: {}]
  // Predicated region
  $region2: #{tile.13} parent=0 // pred_check
    _
  $region3: #{tile.13} parent=0 // pred_check_branch
    %3 = sbr.rel (0) target = $region5
  $region4: #{tile.13} parent=0 // pred_region
    _
  $region5: #{tile.13} parent=0 // pred_fallthru
    _
  %v4 = vld [vmem:[%s0] ss:$0 sm:$0xff]
  %5 = vst [vmem:[%s1] sm:$0x3] %v4

// kernel: tile.0
$region0: #{tile.0}
  %s0 = inlined_call_operand.vmem [shape: f32[2,2], index: 0, kind: input, shape index: {}]
  %s1 = inlined_call_operand.vmem [shape: f32[4,1], index: 1, kind: output, shape index: {}]
  $region1: #{tile.0} parent=0
    #allocation0 [shape = 'u8[4096]{0}', space=vmem, size = 0x1000, scoped, tag = 'scoped mem for output reshape']
    #allocation1 [shape = 'u8[4096]{0}', space=vmem, size = 0x1000, scoped, tag = 'scoped mem for input reshape']
    %s3 = sshllo.u32 0, 2
    %v4 = vld [vmem:[%s0] sm:%s3]
    %5 = vst [vmem:[#allocation1] sm:%s3] %v4
    %v6 = vld [vmem:[#allocation1] sm:$0x3]
    %vm7 = vcmask 7168
    %8 = vst.msk [vmem:[#allocation0] ss:$2 sm:$0x3] %vm7, %v6
    %v9 = vld [vmem:[#allocation1] sm:$0x3]
    %10 = vrot.lane.b32.xlu0 %v9, 127
    %v11 = vpop.permute.xlu0 %10
    %vm12 = vcmask 7168
    %s13 = scalar_lea.vmem [#allocation0], 1
    %14 = vst.msk [vmem:[%s13] ss:$2 sm:$0x3] %vm12, %v11
    %s16 = sshllo.u32 0, 4
    %v18 = vld [vmem:[#allocation0] sm:%s16]
    %s19 = sshllo.u32 0, 4
    %20 = vst [vmem:[%s1] sm:%s19] %v18

// kernel: hrnetv2_skip_forward.8
$region0: #{hrnetv2_skip_forward.8}
  #allocation0 [shape = 'u32[]', space=smem, size = 0x4, offset = 0x4, fixed_abs, tag = 'smem constant byte address 0x4 - core index']
  #allocation1 [shape = 'u32[144,128]{1,0:T(1,128)}', space=vmem, size = 0x12000, scoped, tag = 'internal scratch']
  %s0 = inlined_call_operand.vmem [shape: f32[16,10], index: 0, kind: input, shape index: {}]
  %s1 = inlined_call_operand.vmem [shape: f32[10,256], index: 1, kind: input, shape index: {}]
  %s2 = inlined_call_operand.vmem [shape: f32[16,1], index: 2, kind: input, shape index: {}]
  %s3 = inlined_call_operand.vmem [shape: f32[16,256], index: 3, kind: output, shape index: {}]
  %s4 = sld [smem:[#allocation0]]
  $region22: #{hrnetv2_skip_forward.8} parent=0
    _
  %s6 = ssub.s32 1, %s4
  %s7 = scalar_select 0, %s6, %s4
  // Predicated region
  $region2: #{hrnetv2_skip_forward.8} parent=0 // pred_check
    _
  $region3: #{hrnetv2_skip_forward.8} parent=0 // pred_check_branch
    %9 = sbr.rel (0) target = $region5
  $region4: #{hrnetv2_skip_forward.8} parent=0 // pred_region
    _
  $region5: #{hrnetv2_skip_forward.8} parent=0 // pred_fallthru
    _
  // Predicated region
  $region6: #{hrnetv2_skip_forward.8} parent=0 // pred_check
    _
  $region7: #{hrnetv2_skip_forward.8} parent=0 // pred_check_branch
    %11 = sbr.rel (0) target = $region9
  $region8: #{hrnetv2_skip_forward.8} parent=0 // pred_region
    _
  $region9: #{hrnetv2_skip_forward.8} parent=0 // pred_fallthru
    _
  // Predicated region
  $region10: #{hrnetv2_skip_forward.8} parent=0 // pred_check
    _
  $region11: #{hrnetv2_skip_forward.8} parent=0 // pred_check_branch
    %13 = sbr.rel (0) target = $region13
  $region12: #{hrnetv2_skip_forward.8} parent=0 // pred_region
    _
  $region13: #{hrnetv2_skip_forward.8} parent=0 // pred_fallthru
    _
  %v14 = vld [vmem:[%s0] sm:$0xff]
  %v15 = vld [vmem:[%s0 + $0x8] sm:$0xff]
  %v16 = vld [vmem:[%s1] sm:$0xff]
  %v17 = vld [vmem:[%s1 + $0x8] sm:$0xff]
  %v18 = vld [vmem:[%s1 + $0x10] sm:$0x3]
  %v19 = vld [vmem:[%s1 + $0x18] sm:$0x3]
  %v20 = vld [vmem:[%s2] sm:$0xff]
  %v21 = vld [vmem:[%s2 + $0x8] sm:$0xff]
  %23 = vset.pattern.permute.xlu0 0
  %24 = vperm.xlu0 %23, %v20
  %v25 = vpop.permute.xlu0 %24
  %28 = vset.pattern.permute.xlu0 0
  %29 = vperm.xlu0 %28, %v21
  %v30 = vpop.permute.xlu0 %29
  %vm32 = vcmask 80896
  %v34 = vsel %vm32, %v14, 0
  %v37 = vsel %vm32, %v15, 0
  %vm39 = vcmask 1041408
  %v41 = vsel %vm39, %v18, 0
  %v44 = vsel %vm39, %v19, 0
  %46 = vmatprep.subr.mxu0 %v17
  %47 = vmatpush1.msra.mxu0 %v16
  %48 = vmatprep.subr.mxu0 %v44
  %49 = vmatpush1.msra.mxu0 %v41
  %50 = vmatprep.subr.mxu0 0.0
  %51 = vmatpush1.msra.mxu0 0.0
  %52 = vmatprep.subr.mxu0 0.0
  %53 = vmatpush1.msra.mxu0 0.0
  %54 = vmatprep.subr.mxu0 0.0
  %55 = vmatpush1.msra.mxu0 0.0
  %56 = vmatprep.subr.mxu0 0.0
  %57 = vmatpush1.msra.mxu0 0.0
  %58 = vmatprep.subr.mxu0 0.0
  %59 = vmatpush1.msra.mxu0 0.0
  %60 = vmatprep.subr.mxu0 0.0
  %61 = vmatpush1.msra.mxu0 0.0
  %62 = vmatprep.subr.mxu0 0.0
  %63 = vmatpush1.msra.mxu0 0.0
  %64 = vmatprep.subr.mxu0 0.0
  %65 = vmatpush1.msra.mxu0 0.0
  %66 = vmatprep.subr.mxu0 0.0
  %67 = vmatpush1.msra.mxu0 0.0
  %68 = vmatprep.subr.mxu0 0.0
  %69 = vmatpush1.msra.mxu0 0.0
  %70 = vmatprep.subr.mxu0 0.0
  %71 = vmatpush1.msra.mxu0 0.0
  %72 = vmatprep.subr.mxu0 0.0
  %73 = vmatpush1.msra.mxu0 0.0
  %74 = vmatprep.subr.mxu0 0.0
  %75 = vmatpush1.msra.mxu0 0.0
  %76 = vmatprep.subr.mxu0 0.0
  %77 = vmatpush1.msra.mxu0 0.0
  %78 = vmatprep.subr.mxu0 0.0
  %79 = vmatpush1.msra.mxu0 0.0
  %80 = vmatprep.subr.mxu0 0.0
  %81 = vmatpush1.msra.mxu0 0.0
  %82 = vmatprep.subr.mxu0 0.0
  %83 = vmatpush1.msra.mxu0 0.0
  %84 = vmatprep.subr.mxu0 0.0
  %85 = vmatpush1.msra.mxu0 0.0
  %86 = vmatprep.subr.mxu0 0.0
  %87 = vmatpush1.msra.mxu0 0.0
  %88 = vmatprep.subr.mxu0 0.0
  %89 = vmatpush1.msra.mxu0 0.0
  %90 = vmatprep.subr.mxu0 0.0
  %91 = vmatpush1.msra.mxu0 0.0
  %92 = vmatprep.subr.mxu0 0.0
  %93 = vmatpush1.msra.mxu0 0.0
  %94 = vmatprep.subr.mxu0 0.0
  %95 = vmatpush1.msra.mxu0 0.0
  %96 = vmatprep.subr.mxu0 0.0
  %97 = vmatpush1.msra.mxu0 0.0
  %98 = vmatprep.subr.mxu0 0.0
  %99 = vmatpush1.msra.mxu0 0.0
  %100 = vmatprep.subr.mxu0 0.0
  %101 = vmatpush1.msra.mxu0 0.0
  %102 = vmatprep.subr.mxu0 0.0
  %103 = vmatpush1.msra.mxu0 0.0
  %104 = vmatprep.subr.mxu0 0.0
  %105 = vmatpush1.msra.mxu0 0.0
  %106 = vmatprep.subr.mxu0 0.0
  %107 = vmatpush1.msra.mxu0 0.0
  %108 = vmatprep.subr.mxu0 0.0
  %109 = vmatpush1.msra.mxu0 0.0
  %110 = vmatprep.mubr.f32.mxu0 0.0
  %111 = vmatmul.mubr.f32.gmra.mrb[0].mxu0 %v34
  %v112 = vpop.f32.mrb[0].mxu0
  %v113 = vadd.f32 %v25, %v112
  %v114 = vpop.f32.mrb[0].mxu0
  %v115 = vadd.f32 %v25, %v114
  %116 = vmatprep.mubr.f32.mxu0 0.0
  %117 = vmatmul.mubr.f32.gmra.mrb[0].mxu0 %v37
  %v118 = vpop.f32.mrb[0].mxu0
  %v119 = vadd.f32 %v30, %v118
  %v120 = vpop.f32.mrb[0].mxu0
  %v121 = vadd.f32 %v30, %v120
  %122 = vdwg.mxu0
  %123 = vst [vmem:[%s3] sm:$0xff] %v113
  %124 = vst [vmem:[%s3 + $0x8] sm:$0xff] %v115
  %125 = vst [vmem:[%s3 + $0x10] sm:$0xff] %v119
  %126 = vst [vmem:[%s3 + $0x18] sm:$0xff] %v121
  // Predicated region
  $region14: #{hrnetv2_skip_forward.8} parent=0 // pred_check
    _
  $region15: #{hrnetv2_skip_forward.8} parent=0 // pred_check_branch
    %128 = sbr.rel (0) target = $region17
  $region16: #{hrnetv2_skip_forward.8} parent=0 // pred_region
    _
  $region17: #{hrnetv2_skip_forward.8} parent=0 // pred_fallthru
    _
  // Predicated region
  $region18: #{hrnetv2_skip_forward.8} parent=0 // pred_check
    _
  $region19: #{hrnetv2_skip_forward.8} parent=0 // pred_check_branch
    %130 = sbr.rel (0) target = $region21
  $region20: #{hrnetv2_skip_forward.8} parent=0 // pred_region
    _
  $region21: #{hrnetv2_skip_forward.8} parent=0 // pred_fallthru
    _

// kernel: hrnetv2_skip_forward.9
$region0: #{hrnetv2_skip_forward.9}
  #allocation0 [shape = 'u32[]', space=smem, size = 0x4, offset = 0x4, fixed_abs, tag = 'smem constant byte address 0x4 - core index']
  #allocation1 [shape = 'u32[144,128]{1,0:T(1,128)}', space=vmem, size = 0x12000, scoped, tag = 'internal scratch']
  %s0 = inlined_call_operand.vmem [shape: f32[4,256], index: 0, kind: input, shape index: {}]
  %s1 = inlined_call_operand.vmem [shape: f32[4,1], index: 1, kind: input, shape index: {}]
  %s2 = inlined_call_operand.vmem [shape: f32[4,1], index: 2, kind: input, shape index: {}]
  %s3 = inlined_call_operand.vmem [shape: f32[4,256], index: 3, kind: output, shape index: {}]
  %s4 = sld [smem:[#allocation0]]
  $region22: #{hrnetv2_skip_forward.9} parent=0
    _
  %s6 = ssub.s32 1, %s4
  %s7 = scalar_select 0, %s6, %s4
  // Predicated region
  $region2: #{hrnetv2_skip_forward.9} parent=0 // pred_check
    _
  $region3: #{hrnetv2_skip_forward.9} parent=0 // pred_check_branch
    %9 = sbr.rel (0) target = $region5
  $region4: #{hrnetv2_skip_forward.9} parent=0 // pred_region
    _
  $region5: #{hrnetv2_skip_forward.9} parent=0 // pred_fallthru
    _
  // Predicated region
  $region6: #{hrnetv2_skip_forward.9} parent=0 // pred_check
    _
  $region7: #{hrnetv2_skip_forward.9} parent=0 // pred_check_branch
    %11 = sbr.rel (0) target = $region9
  $region8: #{hrnetv2_skip_forward.9} parent=0 // pred_region
    _
  $region9: #{hrnetv2_skip_forward.9} parent=0 // pred_fallthru
    _
  // Predicated region
  $region10: #{hrnetv2_skip_forward.9} parent=0 // pred_check
    _
  $region11: #{hrnetv2_skip_forward.9} parent=0 // pred_check_branch
    %13 = sbr.rel (0) target = $region13
  $region12: #{hrnetv2_skip_forward.9} parent=0 // pred_region
    _
  $region13: #{hrnetv2_skip_forward.9} parent=0 // pred_fallthru
    _
  %v14 = vld [vmem:[%s0] sm:$0xff]
  %v15 = vld [vmem:[%s1] sm:$0xf]
  %17 = vset.pattern.permute.xlu0 0
  %18 = vperm.xlu0 %17, %v15
  %v19 = vpop.permute.xlu0 %18
  %v21 = vunpack.c.l.s4 839922192
  %v22 = vunpack.c.0.s8 %v21
  %v23 = vlaneseq
  %v24 = vshrl.u32 %v23, 7
  %v25 = vsub.s32 %v22, %v24
  %v26 = vrot.slane %v19, %v25
  %v28 = vmul.f32 %v14, %v26
  %v29 = vld [vmem:[%s2] sm:$0xf]
  %31 = vset.pattern.permute.xlu0 0
  %32 = vperm.xlu0 %31, %v29
  %v33 = vpop.permute.xlu0 %32
  %v35 = vunpack.c.l.s4 839922192
  %v36 = vunpack.c.0.s8 %v35
  %v37 = vlaneseq
  %v38 = vshrl.u32 %v37, 7
  %v39 = vsub.s32 %v36, %v38
  %v40 = vrot.slane %v33, %v39
  %v42 = vadd.f32 %v28, %v40
  %43 = vst [vmem:[%s3] sm:$0xff] %v42
  // Predicated region
  $region14: #{hrnetv2_skip_forward.9} parent=0 // pred_check
    _
  $region15: #{hrnetv2_skip_forward.9} parent=0 // pred_check_branch
    %45 = sbr.rel (0) target = $region17
  $region16: #{hrnetv2_skip_forward.9} parent=0 // pred_region
    _
  $region17: #{hrnetv2_skip_forward.9} parent=0 // pred_fallthru
    _
  // Predicated region
  $region18: #{hrnetv2_skip_forward.9} parent=0 // pred_check
    _
  $region19: #{hrnetv2_skip_forward.9} parent=0 // pred_check_branch
    %47 = sbr.rel (0) target = $region21
  $region20: #{hrnetv2_skip_forward.9} parent=0 // pred_region
    _
  $region21: #{hrnetv2_skip_forward.9} parent=0 // pred_fallthru
    _

// kernel: hrnetv2_skip_forward.10
$region0: #{hrnetv2_skip_forward.10}
  #allocation0 [shape = 'u32[]', space=smem, size = 0x4, offset = 0x4, fixed_abs, tag = 'smem constant byte address 0x4 - core index']
  #allocation1 [shape = 'u32[144,128]{1,0:T(1,128)}', space=vmem, size = 0x12000, scoped, tag = 'internal scratch']
  %s0 = inlined_call_operand.vmem [shape: f32[8,90], index: 0, kind: input, shape index: {}]
  %s1 = inlined_call_operand.vmem [shape: f32[90,512], index: 1, kind: input, shape index: {}]
  %s2 = inlined_call_operand.vmem [shape: f32[8,1], index: 2, kind: input, shape index: {}]
  %s3 = inlined_call_operand.vmem [shape: f32[8,512], index: 3, kind: output, shape index: {}]
  %s4 = sld [smem:[#allocation0]]
  $region22: #{hrnetv2_skip_forward.10} parent=0
    _
  %s6 = ssub.s32 1, %s4
  %s7 = scalar_select 0, %s6, %s4
  // Predicated region
  $region2: #{hrnetv2_skip_forward.10} parent=0 // pred_check
    _
  $region3: #{hrnetv2_skip_forward.10} parent=0 // pred_check_branch
    %9 = sbr.rel (0) target = $region5
  $region4: #{hrnetv2_skip_forward.10} parent=0 // pred_region
    _
  $region5: #{hrnetv2_skip_forward.10} parent=0 // pred_fallthru
    _
  // Predicated region
  $region6: #{hrnetv2_skip_forward.10} parent=0 // pred_check
    _
  $region7: #{hrnetv2_skip_forward.10} parent=0 // pred_check_branch
    %11 = sbr.rel (0) target = $region9
  $region8: #{hrnetv2_skip_forward.10} parent=0 // pred_region
    _
  $region9: #{hrnetv2_skip_forward.10} parent=0 // pred_fallthru
    _
  // Predicated region
  $region10: #{hrnetv2_skip_forward.10} parent=0 // pred_check
    _
  $region11: #{hrnetv2_skip_forward.10} parent=0 // pred_check_branch
    %13 = sbr.rel (0) target = $region13
  $region12: #{hrnetv2_skip_forward.10} parent=0 // pred_region
    _
  $region13: #{hrnetv2_skip_forward.10} parent=0 // pred_fallthru
    _
  %v14 = vld [vmem:[%s0] sm:$0xff]
  %v15 = vld [vmem:[%s1] sm:$0xff]
  %v16 = vld [vmem:[%s1 + $0x8] sm:$0xff]
  %v17 = vld [vmem:[%s1 + $0x10] sm:$0xff]
  %v18 = vld [vmem:[%s1 + $0x18] sm:$0xff]
  %v19 = vld [vmem:[%s1 + $0x20] sm:$0xff]
  %v20 = vld [vmem:[%s1 + $0x28] sm:$0xff]
  %v21 = vld [vmem:[%s1 + $0x30] sm:$0xff]
  %v22 = vld [vmem:[%s1 + $0x38] sm:$0xff]
  %v23 = vld [vmem:[%s1 + $0x40] sm:$0xff]
  %v24 = vld [vmem:[%s1 + $0x48] sm:$0xff]
  %v25 = vld [vmem:[%s1 + $0x50] sm:$0xff]
  %v26 = vld [vmem:[%s1 + $0x58] sm:$0xff]
  %v27 = vld [vmem:[%s1 + $0x60] sm:$0xff]
  %v28 = vld [vmem:[%s1 + $0x68] sm:$0xff]
  %v29 = vld [vmem:[%s1 + $0x70] sm:$0xff]
  %v30 = vld [vmem:[%s1 + $0x78] sm:$0xff]
  %v31 = vld [vmem:[%s1 + $0x80] sm:$0xff]
  %v32 = vld [vmem:[%s1 + $0x88] sm:$0xff]
  %v33 = vld [vmem:[%s1 + $0x90] sm:$0xff]
  %v34 = vld [vmem:[%s1 + $0x98] sm:$0xff]
  %v35 = vld [vmem:[%s1 + $0xa0] sm:$0xff]
  %v36 = vld [vmem:[%s1 + $0xa8] sm:$0xff]
  %v37 = vld [vmem:[%s1 + $0xb0] sm:$0xff]
  %v38 = vld [vmem:[%s1 + $0xb8] sm:$0xff]
  %v39 = vld [vmem:[%s1 + $0xc0] sm:$0xff]
  %v40 = vld [vmem:[%s1 + $0xc8] sm:$0xff]
  %v41 = vld [vmem:[%s1 + $0xd0] sm:$0xff]
  %v42 = vld [vmem:[%s1 + $0xd8] sm:$0xff]
  %v43 = vld [vmem:[%s1 + $0xe0] sm:$0xff]
  %v44 = vld [vmem:[%s1 + $0xe8] sm:$0xff]
  %v45 = vld [vmem:[%s1 + $0xf0] sm:$0xff]
  %v46 = vld [vmem:[%s1 + $0xf8] sm:$0xff]
  %v47 = vld [vmem:[%s1 + $0x100] sm:$0xff]
  %v48 = vld [vmem:[%s1 + $0x108] sm:$0xff]
  %v49 = vld [vmem:[%s1 + $0x110] sm:$0xff]
  %v50 = vld [vmem:[%s1 + $0x118] sm:$0xff]
  %v51 = vld [vmem:[%s1 + $0x120] sm:$0xff]
  %v52 = vld [vmem:[%s1 + $0x128] sm:$0xff]
  %v53 = vld [vmem:[%s1 + $0x130] sm:$0xff]
  %v54 = vld [vmem:[%s1 + $0x138] sm:$0xff]
  %v55 = vld [vmem:[%s1 + $0x140] sm:$0xff]
  %v56 = vld [vmem:[%s1 + $0x148] sm:$0xff]
  %v57 = vld [vmem:[%s1 + $0x150] sm:$0xff]
  %v58 = vld [vmem:[%s1 + $0x158] sm:$0xff]
  %v59 = vld [vmem:[%s1 + $0x160] sm:$0x3]
  %v60 = vld [vmem:[%s1 + $0x168] sm:$0x3]
  %v61 = vld [vmem:[%s1 + $0x170] sm:$0x3]
  %v62 = vld [vmem:[%s1 + $0x178] sm:$0x3]
  %v63 = vld [vmem:[%s2] sm:$0xff]
  %65 = vset.pattern.permute.xlu0 0
  %66 = vperm.xlu0 %65, %v63
  %v67 = vpop.permute.xlu0 %66
  %vm69 = vcmask 736256
  %v71 = vsel %vm69, %v14, 0
  %vm73 = vcmask 1041408
  %v75 = vsel %vm73, %v59, 0
  %v78 = vsel %vm73, %v60, 0
  %v81 = vsel %vm73, %v61, 0
  %v84 = vsel %vm73, %v62, 0
  %86 = vmatprep.subr.mxu0 %v16
  %87 = vmatpush1.msra.mxu0 %v15
  %88 = vmatprep.subr.mxu0 %v20
  %89 = vmatpush1.msra.mxu0 %v19
  %90 = vmatprep.subr.mxu0 %v24
  %91 = vmatpush1.msra.mxu0 %v23
  %92 = vmatprep.subr.mxu0 %v28
  %93 = vmatpush1.msra.mxu0 %v27
  %94 = vmatprep.subr.mxu0 %v32
  %95 = vmatpush1.msra.mxu0 %v31
  %96 = vmatprep.subr.mxu0 %v36
  %97 = vmatpush1.msra.mxu0 %v35
  %98 = vmatprep.subr.mxu0 %v40
  %99 = vmatpush1.msra.mxu0 %v39
  %100 = vmatprep.subr.mxu0 %v44
  %101 = vmatpush1.msra.mxu0 %v43
  %102 = vmatprep.subr.mxu0 %v48
  %103 = vmatpush1.msra.mxu0 %v47
  %104 = vmatprep.subr.mxu0 %v52
  %105 = vmatpush1.msra.mxu0 %v51
  %106 = vmatprep.subr.mxu0 %v56
  %107 = vmatpush1.msra.mxu0 %v55
  %108 = vmatprep.subr.mxu0 %v78
  %109 = vmatpush1.msra.mxu0 %v75
  %110 = vmatprep.subr.mxu0 0.0
  %111 = vmatpush1.msra.mxu0 0.0
  %112 = vmatprep.subr.mxu0 0.0
  %113 = vmatpush1.msra.mxu0 0.0
  %114 = vmatprep.subr.mxu0 0.0
  %115 = vmatpush1.msra.mxu0 0.0
  %116 = vmatprep.subr.mxu0 0.0
  %117 = vmatpush1.msra.mxu0 0.0
  %118 = vmatprep.subr.mxu0 0.0
  %119 = vmatpush1.msra.mxu0 0.0
  %120 = vmatprep.subr.mxu0 0.0
  %121 = vmatpush1.msra.mxu0 0.0
  %122 = vmatprep.subr.mxu0 0.0
  %123 = vmatpush1.msra.mxu0 0.0
  %124 = vmatprep.subr.mxu0 0.0
  %125 = vmatpush1.msra.mxu0 0.0
  %126 = vmatprep.subr.mxu0 0.0
  %127 = vmatpush1.msra.mxu0 0.0
  %128 = vmatprep.subr.mxu0 0.0
  %129 = vmatpush1.msra.mxu0 0.0
  %130 = vmatprep.subr.mxu0 0.0
  %131 = vmatpush1.msra.mxu0 0.0
  %132 = vmatprep.subr.mxu0 0.0
  %133 = vmatpush1.msra.mxu0 0.0
  %134 = vmatprep.subr.mxu0 0.0
  %135 = vmatpush1.msra.mxu0 0.0
  %136 = vmatprep.subr.mxu0 0.0
  %137 = vmatpush1.msra.mxu0 0.0
  %138 = vmatprep.subr.mxu0 0.0
  %139 = vmatpush1.msra.mxu0 0.0
  %140 = vmatprep.subr.mxu0 0.0
  %141 = vmatpush1.msra.mxu0 0.0
  %142 = vmatprep.subr.mxu0 0.0
  %143 = vmatpush1.msra.mxu0 0.0
  %144 = vmatprep.subr.mxu0 0.0
  %145 = vmatpush1.msra.mxu0 0.0
  %146 = vmatprep.subr.mxu0 0.0
  %147 = vmatpush1.msra.mxu0 0.0
  %148 = vmatprep.subr.mxu0 0.0
  %149 = vmatpush1.msra.mxu0 0.0
  %150 = vmatprep.mubr.f32.mxu0 0.0
  %151 = vmatmul.mubr.f32.gmra.mrb[0].mxu0 %v71
  %v152 = vpop.f32.mrb[0].mxu0
  %v153 = vadd.f32 %v67, %v152
  %v154 = vpop.f32.mrb[0].mxu0
  %v155 = vadd.f32 %v67, %v154
  %156 = vdwg.mxu0
  %157 = vmatprep.subr.mxu0 %v18
  %158 = vmatpush1.msra.mxu0 %v17
  %159 = vmatprep.subr.mxu0 %v22
  %160 = vmatpush1.msra.mxu0 %v21
  %161 = vmatprep.subr.mxu0 %v26
  %162 = vmatpush1.msra.mxu0 %v25
  %163 = vmatprep.subr.mxu0 %v30
  %164 = vmatpush1.msra.mxu0 %v29
  %165 = vmatprep.subr.mxu0 %v34
  %166 = vmatpush1.msra.mxu0 %v33
  %167 = vmatprep.subr.mxu0 %v38
  %168 = vmatpush1.msra.mxu0 %v37
  %169 = vmatprep.subr.mxu0 %v42
  %170 = vmatpush1.msra.mxu0 %v41
  %171 = vmatprep.subr.mxu0 %v46
  %172 = vmatpush1.msra.mxu0 %v45
  %173 = vmatprep.subr.mxu0 %v50
  %174 = vmatpush1.msra.mxu0 %v49
  %175 = vmatprep.subr.mxu0 %v54
  %176 = vmatpush1.msra.mxu0 %v53
  %177 = vmatprep.subr.mxu0 %v58
  %178 = vmatpush1.msra.mxu0 %v57
  %179 = vmatprep.subr.mxu0 %v84
  %180 = vmatpush1.msra.mxu0 %v81
  %181 = vmatprep.subr.mxu0 0.0
  %182 = vmatpush1.msra.mxu0 0.0
  %183 = vmatprep.subr.mxu0 0.0
  %184 = vmatpush1.msra.mxu0 0.0
  %185 = vmatprep.subr.mxu0 0.0
  %186 = vmatpush1.msra.mxu0 0.0
  %187 = vmatprep.subr.mxu0 0.0
  %188 = vmatpush1.msra.mxu0 0.0
  %189 = vmatprep.subr.mxu0 0.0
  %190 = vmatpush1.msra.mxu0 0.0
  %191 = vmatprep.subr.mxu0 0.0
  %192 = vmatpush1.msra.mxu0 0.0
  %193 = vmatprep.subr.mxu0 0.0
  %194 = vmatpush1.msra.mxu0 0.0
  %195 = vmatprep.subr.mxu0 0.0
  %196 = vmatpush1.msra.mxu0 0.0
  %197 = vmatprep.subr.mxu0 0.0
  %198 = vmatpush1.msra.mxu0 0.0
  %199 = vmatprep.subr.mxu0 0.0
  %200 = vmatpush1.msra.mxu0 0.0
  %201 = vmatprep.subr.mxu0 0.0
  %202 = vmatpush1.msra.mxu0 0.0
  %203 = vmatprep.subr.mxu0 0.0
  %204 = vmatpush1.msra.mxu0 0.0
  %205 = vmatprep.subr.mxu0 0.0
  %206 = vmatpush1.msra.mxu0 0.0
  %207 = vmatprep.subr.mxu0 0.0
  %208 = vmatpush1.msra.mxu0 0.0
  %209 = vmatprep.subr.mxu0 0.0
  %210 = vmatpush1.msra.mxu0 0.0
  %211 = vmatprep.subr.mxu0 0.0
  %212 = vmatpush1.msra.mxu0 0.0
  %213 = vmatprep.subr.mxu0 0.0
  %214 = vmatpush1.msra.mxu0 0.0
  %215 = vmatprep.subr.mxu0 0.0
  %216 = vmatpush1.msra.mxu0 0.0
  %217 = vmatprep.subr.mxu0 0.0
  %218 = vmatpush1.msra.mxu0 0.0
  %219 = vmatprep.subr.mxu0 0.0
  %220 = vmatpush1.msra.mxu0 0.0
  %221 = vmatprep.mubr.f32.mxu0 0.0
  %222 = vmatmul.mubr.f32.gmra.mrb[0].mxu0 %v71
  %v223 = vpop.f32.mrb[0].mxu0
  %v224 = vadd.f32 %v67, %v223
  %v225 = vpop.f32.mrb[0].mxu0
  %v226 = vadd.f32 %v67, %v225
  %227 = vdwg.mxu0
  %v228 = vmax.f32 %v153, 0.0
  %v229 = vmax.f32 %v155, 0.0
  %v230 = vmax.f32 %v224, 0.0
  %v231 = vmax.f32 %v226, 0.0
  %232 = vst [vmem:[%s3] sm:$0xff] %v228
  %233 = vst [vmem:[%s3 + $0x8] sm:$0xff] %v229
  %234 = vst [vmem:[%s3 + $0x10] sm:$0xff] %v230
  %235 = vst [vmem:[%s3 + $0x18] sm:$0xff] %v231
  // Predicated region
  $region14: #{hrnetv2_skip_forward.10} parent=0 // pred_check
    _
  $region15: #{hrnetv2_skip_forward.10} parent=0 // pred_check_branch
    %237 = sbr.rel (0) target = $region17
  $region16: #{hrnetv2_skip_forward.10} parent=0 // pred_region
    _
  $region17: #{hrnetv2_skip_forward.10} parent=0 // pred_fallthru
    _
  // Predicated region
  $region18: #{hrnetv2_skip_forward.10} parent=0 // pred_check
    _
  $region19: #{hrnetv2_skip_forward.10} parent=0 // pred_check_branch
    %239 = sbr.rel (0) target = $region21
  $region20: #{hrnetv2_skip_forward.10} parent=0 // pred_region
    _
  $region21: #{hrnetv2_skip_forward.10} parent=0 // pred_fallthru
    _

// kernel: hrnetv2_skip_forward.11
$region0: #{hrnetv2_skip_forward.11}
  #allocation0 [shape = 'u32[]', space=smem, size = 0x4, offset = 0x4, fixed_abs, tag = 'smem constant byte address 0x4 - core index']
  #allocation1 [shape = 'u32[144,128]{1,0:T(1,128)}', space=vmem, size = 0x12000, scoped, tag = 'internal scratch']
  %s0 = inlined_call_operand.vmem [shape: f32[4,72], index: 0, kind: input, shape index: {}]
  %s1 = inlined_call_operand.vmem [shape: f32[72,512], index: 1, kind: input, shape index: {}]
  %s2 = inlined_call_operand.vmem [shape: f32[4,1], index: 2, kind: input, shape index: {}]
  %s3 = inlined_call_operand.vmem [shape: f32[4,512], index: 3, kind: output, shape index: {}]
  %s4 = sld [smem:[#allocation0]]
  $region22: #{hrnetv2_skip_forward.11} parent=0
    _
  %s6 = ssub.s32 1, %s4
  %s7 = scalar_select 0, %s6, %s4
  // Predicated region
  $region2: #{hrnetv2_skip_forward.11} parent=0 // pred_check
    _
  $region3: #{hrnetv2_skip_forward.11} parent=0 // pred_check_branch
    %9 = sbr.rel (0) target = $region5
  $region4: #{hrnetv2_skip_forward.11} parent=0 // pred_region
    _
  $region5: #{hrnetv2_skip_forward.11} parent=0 // pred_fallthru
    _
  // Predicated region
  $region6: #{hrnetv2_skip_forward.11} parent=0 // pred_check
    _
  $region7: #{hrnetv2_skip_forward.11} parent=0 // pred_check_branch
    %11 = sbr.rel (0) target = $region9
  $region8: #{hrnetv2_skip_forward.11} parent=0 // pred_region
    _
  $region9: #{hrnetv2_skip_forward.11} parent=0 // pred_fallthru
    _
  // Predicated region
  $region10: #{hrnetv2_skip_forward.11} parent=0 // pred_check
    _
  $region11: #{hrnetv2_skip_forward.11} parent=0 // pred_check_branch
    %13 = sbr.rel (0) target = $region13
  $region12: #{hrnetv2_skip_forward.11} parent=0 // pred_region
    _
  $region13: #{hrnetv2_skip_forward.11} parent=0 // pred_fallthru
    _
  %v14 = vld [vmem:[%s0] sm:$0xf]
  %v15 = vld [vmem:[%s1] sm:$0xff]
  %v16 = vld [vmem:[%s1 + $0x8] sm:$0xff]
  %v17 = vld [vmem:[%s1 + $0x10] sm:$0xff]
  %v18 = vld [vmem:[%s1 + $0x18] sm:$0xff]
  %v19 = vld [vmem:[%s1 + $0x20] sm:$0xff]
  %v20 = vld [vmem:[%s1 + $0x28] sm:$0xff]
  %v21 = vld [vmem:[%s1 + $0x30] sm:$0xff]
  %v22 = vld [vmem:[%s1 + $0x38] sm:$0xff]
  %v23 = vld [vmem:[%s1 + $0x40] sm:$0xff]
  %v24 = vld [vmem:[%s1 + $0x48] sm:$0xff]
  %v25 = vld [vmem:[%s1 + $0x50] sm:$0xff]
  %v26 = vld [vmem:[%s1 + $0x58] sm:$0xff]
  %v27 = vld [vmem:[%s1 + $0x60] sm:$0xff]
  %v28 = vld [vmem:[%s1 + $0x68] sm:$0xff]
  %v29 = vld [vmem:[%s1 + $0x70] sm:$0xff]
  %v30 = vld [vmem:[%s1 + $0x78] sm:$0xff]
  %v31 = vld [vmem:[%s1 + $0x80] sm:$0xff]
  %v32 = vld [vmem:[%s1 + $0x88] sm:$0xff]
  %v33 = vld [vmem:[%s1 + $0x90] sm:$0xff]
  %v34 = vld [vmem:[%s1 + $0x98] sm:$0xff]
  %v35 = vld [vmem:[%s1 + $0xa0] sm:$0xff]
  %v36 = vld [vmem:[%s1 + $0xa8] sm:$0xff]
  %v37 = vld [vmem:[%s1 + $0xb0] sm:$0xff]
  %v38 = vld [vmem:[%s1 + $0xb8] sm:$0xff]
  %v39 = vld [vmem:[%s1 + $0xc0] sm:$0xff]
  %v40 = vld [vmem:[%s1 + $0xc8] sm:$0xff]
  %v41 = vld [vmem:[%s1 + $0xd0] sm:$0xff]
  %v42 = vld [vmem:[%s1 + $0xd8] sm:$0xff]
  %v43 = vld [vmem:[%s1 + $0xe0] sm:$0xff]
  %v44 = vld [vmem:[%s1 + $0xe8] sm:$0xff]
  %v45 = vld [vmem:[%s1 + $0xf0] sm:$0xff]
  %v46 = vld [vmem:[%s1 + $0xf8] sm:$0xff]
  %v47 = vld [vmem:[%s1 + $0x100] sm:$0xff]
  %v48 = vld [vmem:[%s1 + $0x108] sm:$0xff]
  %v49 = vld [vmem:[%s1 + $0x110] sm:$0xff]
  %v50 = vld [vmem:[%s1 + $0x118] sm:$0xff]
  %v51 = vld [vmem:[%s2] sm:$0xf]
  %53 = vset.pattern.permute.xlu0 0
  %54 = vperm.xlu0 %53, %v51
  %v55 = vpop.permute.xlu0 %54
  %vm57 = vcmask 588800
  %v59 = vsel %vm57, %v14, 0
  %61 = vmatprep.subr.mxu0 %v16
  %62 = vmatpush1.msra.mxu0 %v15
  %63 = vmatprep.subr.mxu0 %v20
  %64 = vmatpush1.msra.mxu0 %v19
  %65 = vmatprep.subr.mxu0 %v24
  %66 = vmatpush1.msra.mxu0 %v23
  %67 = vmatprep.subr.mxu0 %v28
  %68 = vmatpush1.msra.mxu0 %v27
  %69 = vmatprep.subr.mxu0 %v32
  %70 = vmatpush1.msra.mxu0 %v31
  %71 = vmatprep.subr.mxu0 %v36
  %72 = vmatpush1.msra.mxu0 %v35
  %73 = vmatprep.subr.mxu0 %v40
  %74 = vmatpush1.msra.mxu0 %v39
  %75 = vmatprep.subr.mxu0 %v44
  %76 = vmatpush1.msra.mxu0 %v43
  %77 = vmatprep.subr.mxu0 %v48
  %78 = vmatpush1.msra.mxu0 %v47
  %79 = vmatprep.subr.mxu0 0.0
  %80 = vmatpush1.msra.mxu0 0.0
  %81 = vmatprep.subr.mxu0 0.0
  %82 = vmatpush1.msra.mxu0 0.0
  %83 = vmatprep.subr.mxu0 0.0
  %84 = vmatpush1.msra.mxu0 0.0
  %85 = vmatprep.subr.mxu0 0.0
  %86 = vmatpush1.msra.mxu0 0.0
  %87 = vmatprep.subr.mxu0 0.0
  %88 = vmatpush1.msra.mxu0 0.0
  %89 = vmatprep.subr.mxu0 0.0
  %90 = vmatpush1.msra.mxu0 0.0
  %91 = vmatprep.subr.mxu0 0.0
  %92 = vmatpush1.msra.mxu0 0.0
  %93 = vmatprep.subr.mxu0 0.0
  %94 = vmatpush1.msra.mxu0 0.0
  %95 = vmatprep.subr.mxu0 0.0
  %96 = vmatpush1.msra.mxu0 0.0
  %97 = vmatprep.subr.mxu0 0.0
  %98 = vmatpush1.msra.mxu0 0.0
  %99 = vmatprep.subr.mxu0 0.0
  %100 = vmatpush1.msra.mxu0 0.0
  %101 = vmatprep.subr.mxu0 0.0
  %102 = vmatpush1.msra.mxu0 0.0
  %103 = vmatprep.subr.mxu0 0.0
  %104 = vmatpush1.msra.mxu0 0.0
  %105 = vmatprep.subr.mxu0 0.0
  %106 = vmatpush1.msra.mxu0 0.0
  %107 = vmatprep.subr.mxu0 0.0
  %108 = vmatpush1.msra.mxu0 0.0
  %109 = vmatprep.subr.mxu0 0.0
  %110 = vmatpush1.msra.mxu0 0.0
  %111 = vmatprep.subr.mxu0 0.0
  %112 = vmatpush1.msra.mxu0 0.0
  %113 = vmatprep.subr.mxu0 0.0
  %114 = vmatpush1.msra.mxu0 0.0
  %115 = vmatprep.subr.mxu0 0.0
  %116 = vmatpush1.msra.mxu0 0.0
  %117 = vmatprep.subr.mxu0 0.0
  %118 = vmatpush1.msra.mxu0 0.0
  %119 = vmatprep.subr.mxu0 0.0
  %120 = vmatpush1.msra.mxu0 0.0
  %121 = vmatprep.subr.mxu0 0.0
  %122 = vmatpush1.msra.mxu0 0.0
  %123 = vmatprep.subr.mxu0 0.0
  %124 = vmatpush1.msra.mxu0 0.0
  %125 = vmatprep.mubr.f32.mxu0 0.0
  %126 = vmatmul.mubr.f32.gmra.mrb[0].mxu0 %v59
  %v127 = vpop.f32.mrb[0].mxu0
  %v128 = vadd.f32 %v55, %v127
  %v129 = vpop.f32.mrb[0].mxu0
  %v130 = vadd.f32 %v55, %v129
  %131 = vdwg.mxu0
  %132 = vmatprep.subr.mxu0 %v18
  %133 = vmatpush1.msra.mxu0 %v17
  %134 = vmatprep.subr.mxu0 %v22
  %135 = vmatpush1.msra.mxu0 %v21
  %136 = vmatprep.subr.mxu0 %v26
  %137 = vmatpush1.msra.mxu0 %v25
  %138 = vmatprep.subr.mxu0 %v30
  %139 = vmatpush1.msra.mxu0 %v29
  %140 = vmatprep.subr.mxu0 %v34
  %141 = vmatpush1.msra.mxu0 %v33
  %142 = vmatprep.subr.mxu0 %v38
  %143 = vmatpush1.msra.mxu0 %v37
  %144 = vmatprep.subr.mxu0 %v42
  %145 = vmatpush1.msra.mxu0 %v41
  %146 = vmatprep.subr.mxu0 %v46
  %147 = vmatpush1.msra.mxu0 %v45
  %148 = vmatprep.subr.mxu0 %v50
  %149 = vmatpush1.msra.mxu0 %v49
  %150 = vmatprep.subr.mxu0 0.0
  %151 = vmatpush1.msra.mxu0 0.0
  %152 = vmatprep.subr.mxu0 0.0
  %153 = vmatpush1.msra.mxu0 0.0
  %154 = vmatprep.subr.mxu0 0.0
  %155 = vmatpush1.msra.mxu0 0.0
  %156 = vmatprep.subr.mxu0 0.0
  %157 = vmatpush1.msra.mxu0 0.0
  %158 = vmatprep.subr.mxu0 0.0
  %159 = vmatpush1.msra.mxu0 0.0
  %160 = vmatprep.subr.mxu0 0.0
  %161 = vmatpush1.msra.mxu0 0.0
  %162 = vmatprep.subr.mxu0 0.0
  %163 = vmatpush1.msra.mxu0 0.0
  %164 = vmatprep.subr.mxu0 0.0
  %165 = vmatpush1.msra.mxu0 0.0
  %166 = vmatprep.subr.mxu0 0.0
  %167 = vmatpush1.msra.mxu0 0.0
  %168 = vmatprep.subr.mxu0 0.0
  %169 = vmatpush1.msra.mxu0 0.0
  %170 = vmatprep.subr.mxu0 0.0
  %171 = vmatpush1.msra.mxu0 0.0
  %172 = vmatprep.subr.mxu0 0.0
  %173 = vmatpush1.msra.mxu0 0.0
  %174 = vmatprep.subr.mxu0 0.0
  %175 = vmatpush1.msra.mxu0 0.0
  %176 = vmatprep.subr.mxu0 0.0
  %177 = vmatpush1.msra.mxu0 0.0
  %178 = vmatprep.subr.mxu0 0.0
  %179 = vmatpush1.msra.mxu0 0.0
  %180 = vmatprep.subr.mxu0 0.0
  %181 = vmatpush1.msra.mxu0 0.0
  %182 = vmatprep.subr.mxu0 0.0
  %183 = vmatpush1.msra.mxu0 0.0
  %184 = vmatprep.subr.mxu0 0.0
  %185 = vmatpush1.msra.mxu0 0.0
  %186 = vmatprep.subr.mxu0 0.0
  %187 = vmatpush1.msra.mxu0 0.0
  %188 = vmatprep.subr.mxu0 0.0
  %189 = vmatpush1.msra.mxu0 0.0
  %190 = vmatprep.subr.mxu0 0.0
  %191 = vmatpush1.msra.mxu0 0.0
  %192 = vmatprep.subr.mxu0 0.0
  %193 = vmatpush1.msra.mxu0 0.0
  %194 = vmatprep.subr.mxu0 0.0
  %195 = vmatpush1.msra.mxu0 0.0
  %196 = vmatprep.mubr.f32.mxu0 0.0
  %197 = vmatmul.mubr.f32.gmra.mrb[0].mxu0 %v59
  %v198 = vpop.f32.mrb[0].mxu0
  %v199 = vadd.f32 %v55, %v198
  %v200 = vpop.f32.mrb[0].mxu0
  %v201 = vadd.f32 %v55, %v200
  %202 = vdwg.mxu0
  %v203 = vsub.f32 0.0, %v128
  %v204 = vsub.f32 0.0, %v130
  %v205 = vsub.f32 0.0, %v199
  %v206 = vsub.f32 0.0, %v201
  %v207 = vmul.f32 %v203, 1.442695
  %v208 = vpow.pop %v207
  %v209 = vmul.f32 %v204, 1.442695
  %v210 = vpow.pop %v209
  %v211 = vmul.f32 %v205, 1.442695
  %v212 = vpow.pop %v211
  %v213 = vmul.f32 %v206, 1.442695
  %v214 = vpow.pop %v213
  %v215 = vadd.f32 %v208, 1.0
  %v216 = vadd.f32 %v210, 1.0
  %v217 = vadd.f32 %v212, 1.0
  %v218 = vadd.f32 %v214, 1.0
  %v219 = vrcp.pop %v215
  %v220 = vmul.f32 1.0, %v219
  %v221 = vrcp.pop %v216
  %v222 = vmul.f32 1.0, %v221
  %v223 = vrcp.pop %v217
  %v224 = vmul.f32 1.0, %v223
  %v225 = vrcp.pop %v218
  %v226 = vmul.f32 1.0, %v225
  %v231 = vcombine.low %v220, %v222
  %v232 = vcombine.low %v224, %v226
  %235 = vst [vmem:[%s3] sm:$0xff] %v231
  %236 = vst [vmem:[%s3 + $0x8] sm:$0xff] %v232
  // Predicated region
  $region14: #{hrnetv2_skip_forward.11} parent=0 // pred_check
    _
  $region15: #{hrnetv2_skip_forward.11} parent=0 // pred_check_branch
    %238 = sbr.rel (0) target = $region17
  $region16: #{hrnetv2_skip_forward.11} parent=0 // pred_region
    _
  $region17: #{hrnetv2_skip_forward.11} parent=0 // pred_fallthru
    _
  // Predicated region
  $region18: #{hrnetv2_skip_forward.11} parent=0 // pred_check
    _
  $region19: #{hrnetv2_skip_forward.11} parent=0 // pred_check_branch
    %240 = sbr.rel (0) target = $region21
  $region20: #{hrnetv2_skip_forward.11} parent=0 // pred_region
    _
  $region21: #{hrnetv2_skip_forward.11} parent=0 // pred_fallthru
    _

</llo_original>
